<compile_context>
chip_gen: v7x
topology: tpu7x:2x2x1
jax: 0.10.0
libtpu: 0.0.40
codegen_flags: <defaults>
</compile_context>

<pallas_src>
import functools

import jax
import jax.numpy as jnp
from jax.experimental import pallas as pl
from jax.experimental.pallas import tpu as pltpu


def _conv_block_kernel(x_ref, w_ref, b_ref, o_ref, *,
                       kernel_size, pool_stride, pad_size, lp, bn,
                       mxu_dtype, accumulate_im2col):
    # x_ref: (pool_stride, Cin, lanes), lanes = bn*lp,
    #        x_ref[r, c, b*lp + l] = x[b, c, l*pool_stride + r]
    # w_ref: (Cout, K*Cin)  im2col weights, w_ref[o, k*Cin + c] = w[o, c, k]
    # b_ref: (Cout, 1)
    # o_ref: (bn, Cout, lp)   <- batch-major output, no wrapper transpose needed
    K, pad = kernel_size, pad_size
    C = x_ref.shape[1]
    lanes = x_ref.shape[2]
    Cout = o_ref.shape[1]

    lane_axis = 1  # last axis of the (C, lanes) working tiles (roll needs >= 0)
    lane_in_elem = jax.lax.broadcasted_iota(jnp.int32, (C, lanes), 1) % lp

    # One boolean edge-mask per distinct shift, shared by the -inf (pool) and
    # 0 (conv) fills — computed once per grid step.
    mask_cache = {}

    def edge_mask(q):
        if q not in mask_cache:
            mask_cache[q] = (lane_in_elem < -q) if q < 0 else (lane_in_elem >= lp - q)
        return mask_cache[q]

    def shifted(src, q, fill):
        # out[., b*lp + l] = src[., b*lp + (l + q)], `fill` where l+q outside
        # [0, lp).  Rolls stay on the XLU; the mask kills values that wrapped
        # across batch-element boundaries in the folded lane axis.
        if q == 0:
            return src
        y = pltpu.roll(src, shift=(-q) % lanes, axis=lane_axis)
        return jnp.where(edge_mask(q), fill, y)

    # ---- MaxPool1d(K, stride=pool_stride, padding=pad): max of K shifted ----
    # ---- stride-phases (PyTorch -inf padding semantics).                 ----
    phases = [x_ref[r].astype(jnp.float32) for r in range(pool_stride)]
    pooled = None
    for k in range(K):
        q, r = divmod(k - pad, pool_stride)        # x index l*stride + k - pad
        s_k = shifted(phases[r], q, float("-inf"))
        pooled = s_k if pooled is None else jnp.maximum(pooled, s_k)

    # ---- PreActConv (ReLU -> zero-padded Conv1d) ----
    w2d = w_ref[...].astype(mxu_dtype)                          # (Cout, K*Cin)
    bias_b = jnp.broadcast_to(b_ref[...].astype(jnp.float32),   # hoisted: once
                              (Cout, lanes))                    # per grid step

    def pre_act_conv(z):
        a = jnp.maximum(z, 0.0)                                 # ReLU (f32)
        if accumulate_im2col:
            # Production channel counts (Cin >= 128): K accumulated matmuls,
            # each with a full >=128 contraction; no (K*Cin, lanes) buffer.
            acc = None
            for k in range(K):
                col = shifted(a, k - pad, 0.0).astype(mxu_dtype)
                part = jnp.dot(w2d[:, k * C:(k + 1) * C], col,
                               preferred_element_type=jnp.float32)
                acc = part if acc is None else acc + part
            return acc + bias_b
        # Tiny Cin: single im2col matmul (the larger contraction is the point).
        cols = [shifted(a, k - pad, 0.0).astype(mxu_dtype) for k in range(K)]
        patches = jnp.concatenate(cols, axis=0)                 # (K*Cin, lanes)
        return jnp.dot(w2d, patches,
                       preferred_element_type=jnp.float32) + bias_b

    # multi_conv(num_layers=2): the SAME PreActConv applied twice + residual.
    out = pooled + pre_act_conv(pre_act_conv(pooled))           # (Cout, lanes)

    # Store directly in (bn, Cout, lp) layout: each slice is a static,
    # 128-lane-aligned vreg selection -> unmasked lane-dense stores, and the
    # wrapper needs no output transpose (kills one HBM round trip).
    for b in range(bn):
        o_ref[b] = out[:, b * lp:(b + 1) * lp].astype(o_ref.dtype)


def _num_tensorcores_per_chip():
    try:
        kind = jax.devices()[0].device_kind.lower()
    except Exception:
        return 1
    return 2 if "v7" in kind else 1


def _per_elem_vmem_bytes(C, lp, pool_stride, kernel_size):
    # Double-buffered I/O blocks + in-kernel temporaries, f32 (review formula).
    return (2 * pool_stride * C + 2 * C + (3 + kernel_size) * C) * lp * 4


def _pick_block_batch(N, C, lp, pool_stride, kernel_size):
    n_cores = _num_tensorcores_per_chip()
    per_elem = _per_elem_vmem_bytes(C, lp, pool_stride, kernel_size)
    # v7x: only 64 MiB VMEM and both cores' double-buffered sets coexist.
    budget = (12 << 20) if n_cores > 1 else (24 << 20)
    best = 1
    for bn in range(1, N + 1):
        if N % bn:
            continue
        steps = N // bn
        if steps % n_cores:       # keep the grid evenly shardable across TCs
            continue
        if bn * per_elem > budget:
            continue
        best = bn
    return best


def conv_block_forward(x, weight, bias, *, kernel_size, pool_stride, pad_size,
                       block_batch=None):
    """ConvBlock.forward(x, num_layers=2).  x: (N, C, L) float32 -> (N, C, L//stride)."""
    N, C, L = x.shape
    Cout, Cin, K = weight.shape
    assert Cin == C and Cout == C and K == kernel_size
    # conv must preserve length so `out + out_f` broadcasts like PyTorch
    assert kernel_size == 2 * pad_size + 1
    assert L % pool_stride == 0
    lp = (L + 2 * pad_size - kernel_size) // pool_stride + 1
    assert lp == L // pool_stride
    # Keep output tiles lane-dense (unmasked vst): lp must be a multiple of 128.
    # TODO(synk): pad L in the wrapper (and slice the result) for other configs.
    assert lp % 128 == 0

    Bn = block_batch if block_batch is not None else _pick_block_batch(
        N, C, lp, pool_stride, kernel_size)
    Bn = min(Bn, N)
    assert N % Bn == 0
    lanes = Bn * lp

    # Production channel counts: bf16 MXU operands (f32 accumulate) and
    # accumulated im2col.  Off for tiny C (the tested path stays pure f32).
    use_bf16_mxu = Cin >= 128
    accumulate_im2col = Cin >= 128
    mxu_dtype = jnp.bfloat16 if use_bf16_mxu else jnp.float32

    # --- wrapper-side fold (the only remaining XLA relayout; the output is ---
    # --- written by the kernel in its final (N, Cout, lp) layout).         ---
    #   x_folded[r, c, b*lp + l] = x[b, c, l*pool_stride + r]
    # TODO(synk): for stacked DPCNN ConvBlocks carry this folded layout between
    # blocks (fold once, unfold never) to remove this HBM round trip as well.
    x_folded = jnp.transpose(x.reshape(N, C, lp, pool_stride), (3, 1, 0, 2))
    x_folded = x_folded.reshape(pool_stride, C, N * lp)
    # im2col weights: w2d[o, k*Cin + c] = weight[o, c, k]
    w2d = jnp.transpose(weight, (0, 2, 1)).reshape(Cout, K * Cin)
    if use_bf16_mxu:
        w2d = w2d.astype(jnp.bfloat16)            # pre-cast once in the wrapper
    b_col = bias.reshape(Cout, 1)

    kernel = functools.partial(
        _conv_block_kernel, kernel_size=K, pool_stride=pool_stride,
        pad_size=pad_size, lp=lp, bn=Bn, mxu_dtype=mxu_dtype,
        accumulate_im2col=accumulate_im2col)

    # Raise the scoped-VMEM limit only when the per-step estimate needs it.
    est_step_bytes = Bn * _per_elem_vmem_bytes(C, lp, pool_stride, K)
    vmem_limit = None
    if est_step_bytes > (12 << 20):
        vmem_limit = min(int(2 * est_step_bytes), 100 << 20)

    out = pl.pallas_call(
        kernel,
        out_shape=jax.ShapeDtypeStruct((N, Cout, lp), x.dtype),
        grid_spec=pltpu.PrefetchScalarGridSpec(
            num_scalar_prefetch=0,
            grid=(N // Bn,),        # grid=1 on 1-TC chips, multiple of 2 on v7x
            in_specs=[
                pl.BlockSpec((pool_stride, C, lanes), lambda i: (0, 0, i)),
                pl.BlockSpec((Cout, K * Cin), lambda i: (0, 0)),   # constant idx
                pl.BlockSpec((Cout, 1), lambda i: (0, 0)),         # (resident)
            ],
            out_specs=pl.BlockSpec((Bn, Cout, lp), lambda i: (i, 0, 0)),
        ),
        compiler_params=pltpu.CompilerParams(
            dimension_semantics=("parallel",),
            vmem_limit_bytes=vmem_limit),
    )(x_folded, w2d, b_col)

    return out   # already (N, Cout, lp): no wrapper-side transpose


def _reference(x, weight, bias, *, kernel_size, pool_stride, pad_size):
    """Pure-JAX reference matching the PyTorch module semantics."""
    pooled = jax.lax.reduce_window(
        x, -jnp.inf, jax.lax.max,
        window_dimensions=(1, 1, kernel_size),
        window_strides=(1, 1, pool_stride),
        padding=((0, 0), (0, 0), (pad_size, pad_size)))

    def pre_act_conv(z):
        a = jnp.maximum(z, 0.0)
        y = jax.lax.conv_general_dilated(
            a, weight, window_strides=(1,),
            padding=((pad_size, pad_size),),
            dimension_numbers=("NCH", "OIH", "NCH"),
            precision=jax.lax.Precision.HIGHEST)
        return y + bias[None, :, None]

    return pooled + pre_act_conv(pre_act_conv(pooled))


if __name__ == "__main__":
    N, C, L = 16, 8, 256
    kernel_size, pool_stride, pad_size = 3, 2, 1

    key = jax.random.PRNGKey(0)
    kx, kw, kb = jax.random.split(key, 3)
    x = jax.random.normal(kx, (N, C, L), jnp.float32)
    weight = 0.1 * jax.random.normal(kw, (C, C, kernel_size), jnp.float32)
    bias = 0.1 * jax.random.normal(kb, (C,), jnp.float32)

    out = conv_block_forward(x, weight, bias, kernel_size=kernel_size,
                             pool_stride=pool_stride, pad_size=pad_size)
    out = jax.block_until_ready(out)

    ref = _reference(x, weight, bias, kernel_size=kernel_size,
                     pool_stride=pool_stride, pad_size=pad_size)
    assert out.shape == ref.shape, (out.shape, ref.shape)
    max_err = float(jnp.max(jnp.abs(out - ref)))
    assert max_err < 2e-3, max_err

    print("KERNEL_OK")
</pallas_src>

<mosaic_0001>
module attributes {stable_mosaic.version = 11 : i64} {
  func.func @_conv_block_kernel(%arg0: i32, %arg1: memref<2x8x2048xf32, #tpu.memory_space<vmem>>, %arg2: memref<8x24xf32, #tpu.memory_space<vmem>>, %arg3: memref<8x1xf32, #tpu.memory_space<vmem>>, %arg4: memref<16x8x128xf32, #tpu.memory_space<vmem>>) attributes {dimension_semantics = [#tpu.dimension_semantics<parallel>], iteration_bounds = array<i64: 1>, scalar_prefetch = 0 : i64, scratch_operands = 0 : i64, tpu.core_type = #tpu.core_type<tc>, window_params = [{transform_indices = @transform_0, window_bounds = array<i64: 2, 8, 2048>}, {pipeline_mode = #tpu.pipeline_mode<synchronous>, transform_indices = @transform_1, window_bounds = array<i64: 8, 24>}, {pipeline_mode = #tpu.pipeline_mode<synchronous>, transform_indices = @transform_2, window_bounds = array<i64: 8, 1>}, {transform_indices = @transform_3, window_bounds = array<i64: 16, 8, 128>}]} {
    %0 = tpu.iota {dimensions = array<i32: 1>} : vector<8x2048xi32>
    %c128_i32 = arith.constant 128 : i32
    %c0_i32 = arith.constant 0 : i32
    %1 = arith.cmpi eq, %c128_i32, %c0_i32 : i32
    %c1_i32 = arith.constant 1 : i32
    %2 = arith.select %1, %c1_i32, %c128_i32 : i32
    %3 = vector.broadcast %2 : i32 to vector<8x2048xi32>
    %4 = arith.remsi %0, %3 : vector<8x2048xi32>
    %c0_i32_0 = arith.constant 0 : i32
    %5 = vector.broadcast %c0_i32_0 : i32 to vector<8x2048xi32>
    %6 = arith.cmpi ne, %4, %5 : vector<8x2048xi32>
    %c0_i32_1 = arith.constant 0 : i32
    %7 = vector.broadcast %c0_i32_1 : i32 to vector<8x2048xi32>
    %8 = arith.cmpi slt, %4, %7 : vector<8x2048xi32>
    %c0_i32_2 = arith.constant 0 : i32
    %9 = arith.cmpi slt, %2, %c0_i32_2 : i32
    %10 = vector.broadcast %9 : i1 to vector<8x2048xi1>
    %11 = vector.broadcast %10 : vector<8x2048xi1> to vector<8x2048xi1>
    %12 = arith.xori %8, %11 : vector<8x2048xi1>
    %13 = arith.andi %12, %6 : vector<8x2048xi1>
    %14 = vector.broadcast %2 : i32 to vector<8x2048xi32>
    %15 = arith.addi %4, %14 : vector<8x2048xi32>
    %16 = arith.select %13, %15, %4 : vector<8x2048xi1>, vector<8x2048xi32>
    %c0 = arith.constant 0 : index
    %c0_3 = arith.constant 0 : index
    %c0_4 = arith.constant 0 : index
    %17 = vector.load %arg1[%c0, %c0_3, %c0_4] : memref<2x8x2048xf32, #tpu.memory_space<vmem>>, vector<1x8x2048xf32>
    %18 = vector.shape_cast %17 : vector<1x8x2048xf32> to vector<8x2048xf32>
    %c1 = arith.constant 1 : index
    %c0_5 = arith.constant 0 : index
    %c0_6 = arith.constant 0 : index
    %19 = vector.load %arg1[%c1, %c0_5, %c0_6] : memref<2x8x2048xf32, #tpu.memory_space<vmem>>, vector<1x8x2048xf32>
    %20 = vector.shape_cast %19 : vector<1x8x2048xf32> to vector<8x2048xf32>
    %c1_i32_7 = arith.constant 1 : i32
    %21 = tpu.dynamic_rotate %20 by %c1_i32_7 dim 1 : vector<8x2048xf32>, i32 -> vector<8x2048xf32>
    %c1_i32_8 = arith.constant 1 : i32
    %22 = vector.broadcast %c1_i32_8 : i32 to vector<8x2048xi32>
    %23 = arith.cmpi slt, %16, %22 : vector<8x2048xi32>
    %cst = arith.constant 0xFF800000 : f32
    %24 = vector.broadcast %cst : f32 to vector<8x2048xf32>
    %25 = arith.select %23, %24, %21 : vector<8x2048xi1>, vector<8x2048xf32>
    %26 = arith.maximumf %25, %18 : vector<8x2048xf32>
    %27 = arith.maximumf %26, %20 : vector<8x2048xf32>
    %c0_9 = arith.constant 0 : index
    %c0_10 = arith.constant 0 : index
    %28 = vector.load %arg2[%c0_9, %c0_10] : memref<8x24xf32, #tpu.memory_space<vmem>>, vector<8x24xf32>
    %c0_11 = arith.constant 0 : index
    %c0_12 = arith.constant 0 : index
    %29 = vector.load %arg3[%c0_11, %c0_12] : memref<8x1xf32, #tpu.memory_space<vmem>>, vector<8x1xf32>
    %30 = vector.shape_cast %29 : vector<8x1xf32> to vector<8x1xf32>
    %31 = vector.broadcast %30 : vector<8x1xf32> to vector<8x2048xf32>
    %cst_13 = arith.constant 0.000000e+00 : f32
    %32 = vector.broadcast %cst_13 : f32 to vector<8x2048xf32>
    %33 = arith.maximumf %27, %32 : vector<8x2048xf32>
    %c1_i32_14 = arith.constant 1 : i32
    %34 = tpu.dynamic_rotate %33 by %c1_i32_14 dim 1 : vector<8x2048xf32>, i32 -> vector<8x2048xf32>
    %cst_15 = arith.constant 0.000000e+00 : f32
    %35 = vector.broadcast %cst_15 : f32 to vector<8x2048xf32>
    %36 = arith.select %23, %35, %34 : vector<8x2048xi1>, vector<8x2048xf32>
    %c2047_i32 = arith.constant 2047 : i32
    %37 = tpu.dynamic_rotate %33 by %c2047_i32 dim 1 : vector<8x2048xf32>, i32 -> vector<8x2048xf32>
    %c127_i32 = arith.constant 127 : i32
    %38 = vector.broadcast %c127_i32 : i32 to vector<8x2048xi32>
    %39 = arith.cmpi sge, %16, %38 : vector<8x2048xi32>
    %cst_16 = arith.constant 0.000000e+00 : f32
    %40 = vector.broadcast %cst_16 : f32 to vector<8x2048xf32>
    %41 = arith.select %39, %40, %37 : vector<8x2048xi1>, vector<8x2048xf32>
    %42 = tpu.concatenate %36, %33, %41 in 0 : vector<8x2048xf32>, vector<8x2048xf32>, vector<8x2048xf32> -> vector<24x2048xf32>
    %cst_17 = arith.constant dense<0.000000e+00> : vector<8x2048xf32>
    %43 = tpu.matmul %28, %42, %cst_17 {dimension_numbers = #tpu.dot_dimension_numbers<[1], [0], [0], [1], [0, 0, 1, 1], [], []>} : vector<8x24xf32>, vector<24x2048xf32>, vector<8x2048xf32> -> vector<8x2048xf32>
    %44 = arith.addf %43, %31 : vector<8x2048xf32>
    %cst_18 = arith.constant 0.000000e+00 : f32
    %45 = vector.broadcast %cst_18 : f32 to vector<8x2048xf32>
    %46 = arith.maximumf %44, %45 : vector<8x2048xf32>
    %c1_i32_19 = arith.constant 1 : i32
    %47 = tpu.dynamic_rotate %46 by %c1_i32_19 dim 1 : vector<8x2048xf32>, i32 -> vector<8x2048xf32>
    %cst_20 = arith.constant 0.000000e+00 : f32
    %48 = vector.broadcast %cst_20 : f32 to vector<8x2048xf32>
    %49 = arith.select %23, %48, %47 : vector<8x2048xi1>, vector<8x2048xf32>
    %c2047_i32_21 = arith.constant 2047 : i32
    %50 = tpu.dynamic_rotate %46 by %c2047_i32_21 dim 1 : vector<8x2048xf32>, i32 -> vector<8x2048xf32>
    %cst_22 = arith.constant 0.000000e+00 : f32
    %51 = vector.broadcast %cst_22 : f32 to vector<8x2048xf32>
    %52 = arith.select %39, %51, %50 : vector<8x2048xi1>, vector<8x2048xf32>
    %53 = tpu.concatenate %49, %46, %52 in 0 : vector<8x2048xf32>, vector<8x2048xf32>, vector<8x2048xf32> -> vector<24x2048xf32>
    %cst_23 = arith.constant dense<0.000000e+00> : vector<8x2048xf32>
    %54 = tpu.matmul %28, %53, %cst_23 {dimension_numbers = #tpu.dot_dimension_numbers<[1], [0], [0], [1], [0, 0, 1, 1], [], []>} : vector<8x24xf32>, vector<24x2048xf32>, vector<8x2048xf32> -> vector<8x2048xf32>
    %55 = arith.addf %54, %31 : vector<8x2048xf32>
    %56 = arith.addf %27, %55 : vector<8x2048xf32>
    %57 = vector.extract_strided_slice %56 {offsets = [0, 0], sizes = [8, 128], strides = [1, 1]} : vector<8x2048xf32> to vector<8x128xf32>
    %c0_24 = arith.constant 0 : index
    %c0_25 = arith.constant 0 : index
    %c0_26 = arith.constant 0 : index
    %58 = vector.load %arg4[%c0_24, %c0_25, %c0_26] : memref<16x8x128xf32, #tpu.memory_space<vmem>>, vector<1x8x128xf32>
    %59 = vector.shape_cast %58 : vector<1x8x128xf32> to vector<8x128xf32>
    %60 = vector.shape_cast %57 : vector<8x128xf32> to vector<1x8x128xf32>
    tpu.vector_store %arg4[%c0_24, %c0_25, %c0_26], %60 {strides = array<i32>} : memref<16x8x128xf32, #tpu.memory_space<vmem>>, vector<1x8x128xf32>,
    %61 = vector.extract_strided_slice %56 {offsets = [0, 128], sizes = [8, 128], strides = [1, 1]} : vector<8x2048xf32> to vector<8x128xf32>
    %c1_27 = arith.constant 1 : index
    %c0_28 = arith.constant 0 : index
    %c0_29 = arith.constant 0 : index
    %62 = vector.load %arg4[%c1_27, %c0_28, %c0_29] : memref<16x8x128xf32, #tpu.memory_space<vmem>>, vector<1x8x128xf32>
    %63 = vector.shape_cast %62 : vector<1x8x128xf32> to vector<8x128xf32>
    %64 = vector.shape_cast %61 : vector<8x128xf32> to vector<1x8x128xf32>
    tpu.vector_store %arg4[%c1_27, %c0_28, %c0_29], %64 {strides = array<i32>} : memref<16x8x128xf32, #tpu.memory_space<vmem>>, vector<1x8x128xf32>,
    %65 = vector.extract_strided_slice %56 {offsets = [0, 256], sizes = [8, 128], strides = [1, 1]} : vector<8x2048xf32> to vector<8x128xf32>
    %c2 = arith.constant 2 : index
    %c0_30 = arith.constant 0 : index
    %c0_31 = arith.constant 0 : index
    %66 = vector.load %arg4[%c2, %c0_30, %c0_31] : memref<16x8x128xf32, #tpu.memory_space<vmem>>, vector<1x8x128xf32>
    %67 = vector.shape_cast %66 : vector<1x8x128xf32> to vector<8x128xf32>
    %68 = vector.shape_cast %65 : vector<8x128xf32> to vector<1x8x128xf32>
    tpu.vector_store %arg4[%c2, %c0_30, %c0_31], %68 {strides = array<i32>} : memref<16x8x128xf32, #tpu.memory_space<vmem>>, vector<1x8x128xf32>,
    %69 = vector.extract_strided_slice %56 {offsets = [0, 384], sizes = [8, 128], strides = [1, 1]} : vector<8x2048xf32> to vector<8x128xf32>
    %c3 = arith.constant 3 : index
    %c0_32 = arith.constant 0 : index
    %c0_33 = arith.constant 0 : index
    %70 = vector.load %arg4[%c3, %c0_32, %c0_33] : memref<16x8x128xf32, #tpu.memory_space<vmem>>, vector<1x8x128xf32>
    %71 = vector.shape_cast %70 : vector<1x8x128xf32> to vector<8x128xf32>
    %72 = vector.shape_cast %69 : vector<8x128xf32> to vector<1x8x128xf32>
    tpu.vector_store %arg4[%c3, %c0_32, %c0_33], %72 {strides = array<i32>} : memref<16x8x128xf32, #tpu.memory_space<vmem>>, vector<1x8x128xf32>,
    %73 = vector.extract_strided_slice %56 {offsets = [0, 512], sizes = [8, 128], strides = [1, 1]} : vector<8x2048xf32> to vector<8x128xf32>
    %c4 = arith.constant 4 : index
    %c0_34 = arith.constant 0 : index
    %c0_35 = arith.constant 0 : index
    %74 = vector.load %arg4[%c4, %c0_34, %c0_35] : memref<16x8x128xf32, #tpu.memory_space<vmem>>, vector<1x8x128xf32>
    %75 = vector.shape_cast %74 : vector<1x8x128xf32> to vector<8x128xf32>
    %76 = vector.shape_cast %73 : vector<8x128xf32> to vector<1x8x128xf32>
    tpu.vector_store %arg4[%c4, %c0_34, %c0_35], %76 {strides = array<i32>} : memref<16x8x128xf32, #tpu.memory_space<vmem>>, vector<1x8x128xf32>,
    %77 = vector.extract_strided_slice %56 {offsets = [0, 640], sizes = [8, 128], strides = [1, 1]} : vector<8x2048xf32> to vector<8x128xf32>
    %c5 = arith.constant 5 : index
    %c0_36 = arith.constant 0 : index
    %c0_37 = arith.constant 0 : index
    %78 = vector.load %arg4[%c5, %c0_36, %c0_37] : memref<16x8x128xf32, #tpu.memory_space<vmem>>, vector<1x8x128xf32>
    %79 = vector.shape_cast %78 : vector<1x8x128xf32> to vector<8x128xf32>
    %80 = vector.shape_cast %77 : vector<8x128xf32> to vector<1x8x128xf32>
    tpu.vector_store %arg4[%c5, %c0_36, %c0_37], %80 {strides = array<i32>} : memref<16x8x128xf32, #tpu.memory_space<vmem>>, vector<1x8x128xf32>,
    %81 = vector.extract_strided_slice %56 {offsets = [0, 768], sizes = [8, 128], strides = [1, 1]} : vector<8x2048xf32> to vector<8x128xf32>
    %c6 = arith.constant 6 : index
    %c0_38 = arith.constant 0 : index
    %c0_39 = arith.constant 0 : index
    %82 = vector.load %arg4[%c6, %c0_38, %c0_39] : memref<16x8x128xf32, #tpu.memory_space<vmem>>, vector<1x8x128xf32>
    %83 = vector.shape_cast %82 : vector<1x8x128xf32> to vector<8x128xf32>
    %84 = vector.shape_cast %81 : vector<8x128xf32> to vector<1x8x128xf32>
    tpu.vector_store %arg4[%c6, %c0_38, %c0_39], %84 {strides = array<i32>} : memref<16x8x128xf32, #tpu.memory_space<vmem>>, vector<1x8x128xf32>,
    %85 = vector.extract_strided_slice %56 {offsets = [0, 896], sizes = [8, 128], strides = [1, 1]} : vector<8x2048xf32> to vector<8x128xf32>
    %c7 = arith.constant 7 : index
    %c0_40 = arith.constant 0 : index
    %c0_41 = arith.constant 0 : index
    %86 = vector.load %arg4[%c7, %c0_40, %c0_41] : memref<16x8x128xf32, #tpu.memory_space<vmem>>, vector<1x8x128xf32>
    %87 = vector.shape_cast %86 : vector<1x8x128xf32> to vector<8x128xf32>
    %88 = vector.shape_cast %85 : vector<8x128xf32> to vector<1x8x128xf32>
    tpu.vector_store %arg4[%c7, %c0_40, %c0_41], %88 {strides = array<i32>} : memref<16x8x128xf32, #tpu.memory_space<vmem>>, vector<1x8x128xf32>,
    %89 = vector.extract_strided_slice %56 {offsets = [0, 1024], sizes = [8, 128], strides = [1, 1]} : vector<8x2048xf32> to vector<8x128xf32>
    %c8 = arith.constant 8 : index
    %c0_42 = arith.constant 0 : index
    %c0_43 = arith.constant 0 : index
    %90 = vector.load %arg4[%c8, %c0_42, %c0_43] : memref<16x8x128xf32, #tpu.memory_space<vmem>>, vector<1x8x128xf32>
    %91 = vector.shape_cast %90 : vector<1x8x128xf32> to vector<8x128xf32>
    %92 = vector.shape_cast %89 : vector<8x128xf32> to vector<1x8x128xf32>
    tpu.vector_store %arg4[%c8, %c0_42, %c0_43], %92 {strides = array<i32>} : memref<16x8x128xf32, #tpu.memory_space<vmem>>, vector<1x8x128xf32>,
    %93 = vector.extract_strided_slice %56 {offsets = [0, 1152], sizes = [8, 128], strides = [1, 1]} : vector<8x2048xf32> to vector<8x128xf32>
    %c9 = arith.constant 9 : index
    %c0_44 = arith.constant 0 : index
    %c0_45 = arith.constant 0 : index
    %94 = vector.load %arg4[%c9, %c0_44, %c0_45] : memref<16x8x128xf32, #tpu.memory_space<vmem>>, vector<1x8x128xf32>
    %95 = vector.shape_cast %94 : vector<1x8x128xf32> to vector<8x128xf32>
    %96 = vector.shape_cast %93 : vector<8x128xf32> to vector<1x8x128xf32>
    tpu.vector_store %arg4[%c9, %c0_44, %c0_45], %96 {strides = array<i32>} : memref<16x8x128xf32, #tpu.memory_space<vmem>>, vector<1x8x128xf32>,
    %97 = vector.extract_strided_slice %56 {offsets = [0, 1280], sizes = [8, 128], strides = [1, 1]} : vector<8x2048xf32> to vector<8x128xf32>
    %c10 = arith.constant 10 : index
    %c0_46 = arith.constant 0 : index
    %c0_47 = arith.constant 0 : index
    %98 = vector.load %arg4[%c10, %c0_46, %c0_47] : memref<16x8x128xf32, #tpu.memory_space<vmem>>, vector<1x8x128xf32>
    %99 = vector.shape_cast %98 : vector<1x8x128xf32> to vector<8x128xf32>
    %100 = vector.shape_cast %97 : vector<8x128xf32> to vector<1x8x128xf32>
    tpu.vector_store %arg4[%c10, %c0_46, %c0_47], %100 {strides = array<i32>} : memref<16x8x128xf32, #tpu.memory_space<vmem>>, vector<1x8x128xf32>,
    %101 = vector.extract_strided_slice %56 {offsets = [0, 1408], sizes = [8, 128], strides = [1, 1]} : vector<8x2048xf32> to vector<8x128xf32>
    %c11 = arith.constant 11 : index
    %c0_48 = arith.constant 0 : index
    %c0_49 = arith.constant 0 : index
    %102 = vector.load %arg4[%c11, %c0_48, %c0_49] : memref<16x8x128xf32, #tpu.memory_space<vmem>>, vector<1x8x128xf32>
    %103 = vector.shape_cast %102 : vector<1x8x128xf32> to vector<8x128xf32>
    %104 = vector.shape_cast %101 : vector<8x128xf32> to vector<1x8x128xf32>
    tpu.vector_store %arg4[%c11, %c0_48, %c0_49], %104 {strides = array<i32>} : memref<16x8x128xf32, #tpu.memory_space<vmem>>, vector<1x8x128xf32>,
    %105 = vector.extract_strided_slice %56 {offsets = [0, 1536], sizes = [8, 128], strides = [1, 1]} : vector<8x2048xf32> to vector<8x128xf32>
    %c12 = arith.constant 12 : index
    %c0_50 = arith.constant 0 : index
    %c0_51 = arith.constant 0 : index
    %106 = vector.load %arg4[%c12, %c0_50, %c0_51] : memref<16x8x128xf32, #tpu.memory_space<vmem>>, vector<1x8x128xf32>
    %107 = vector.shape_cast %106 : vector<1x8x128xf32> to vector<8x128xf32>
    %108 = vector.shape_cast %105 : vector<8x128xf32> to vector<1x8x128xf32>
    tpu.vector_store %arg4[%c12, %c0_50, %c0_51], %108 {strides = array<i32>} : memref<16x8x128xf32, #tpu.memory_space<vmem>>, vector<1x8x128xf32>,
    %109 = vector.extract_strided_slice %56 {offsets = [0, 1664], sizes = [8, 128], strides = [1, 1]} : vector<8x2048xf32> to vector<8x128xf32>
    %c13 = arith.constant 13 : index
    %c0_52 = arith.constant 0 : index
    %c0_53 = arith.constant 0 : index
    %110 = vector.load %arg4[%c13, %c0_52, %c0_53] : memref<16x8x128xf32, #tpu.memory_space<vmem>>, vector<1x8x128xf32>
    %111 = vector.shape_cast %110 : vector<1x8x128xf32> to vector<8x128xf32>
    %112 = vector.shape_cast %109 : vector<8x128xf32> to vector<1x8x128xf32>
    tpu.vector_store %arg4[%c13, %c0_52, %c0_53], %112 {strides = array<i32>} : memref<16x8x128xf32, #tpu.memory_space<vmem>>, vector<1x8x128xf32>,
    %113 = vector.extract_strided_slice %56 {offsets = [0, 1792], sizes = [8, 128], strides = [1, 1]} : vector<8x2048xf32> to vector<8x128xf32>
    %c14 = arith.constant 14 : index
    %c0_54 = arith.constant 0 : index
    %c0_55 = arith.constant 0 : index
    %114 = vector.load %arg4[%c14, %c0_54, %c0_55] : memref<16x8x128xf32, #tpu.memory_space<vmem>>, vector<1x8x128xf32>
    %115 = vector.shape_cast %114 : vector<1x8x128xf32> to vector<8x128xf32>
    %116 = vector.shape_cast %113 : vector<8x128xf32> to vector<1x8x128xf32>
    tpu.vector_store %arg4[%c14, %c0_54, %c0_55], %116 {strides = array<i32>} : memref<16x8x128xf32, #tpu.memory_space<vmem>>, vector<1x8x128xf32>,
    %117 = vector.extract_strided_slice %56 {offsets = [0, 1920], sizes = [8, 128], strides = [1, 1]} : vector<8x2048xf32> to vector<8x128xf32>
    %c15 = arith.constant 15 : index
    %c0_56 = arith.constant 0 : index
    %c0_57 = arith.constant 0 : index
    %118 = vector.load %arg4[%c15, %c0_56, %c0_57] : memref<16x8x128xf32, #tpu.memory_space<vmem>>, vector<1x8x128xf32>
    %119 = vector.shape_cast %118 : vector<1x8x128xf32> to vector<8x128xf32>
    %120 = vector.shape_cast %117 : vector<8x128xf32> to vector<1x8x128xf32>
    tpu.vector_store %arg4[%c15, %c0_56, %c0_57], %120 {strides = array<i32>} : memref<16x8x128xf32, #tpu.memory_space<vmem>>, vector<1x8x128xf32>,
    return
  }
  func.func @transform_0(%arg0: i32) -> (i32, i32, i32) {
    %c0_i32 = arith.constant 0 : i32
    %c0_i32_0 = arith.constant 0 : i32
    %c0_i32_1 = arith.constant 0 : i32
    return %c0_i32, %c0_i32_0, %arg0 : i32, i32, i32
  }
  func.func @transform_1(%arg0: i32) -> (i32, i32) {
    %c0_i32 = arith.constant 0 : i32
    %c0_i32_0 = arith.constant 0 : i32
    %c0_i32_1 = arith.constant 0 : i32
    return %c0_i32, %c0_i32_0 : i32, i32
  }
  func.func @transform_2(%arg0: i32) -> (i32, i32) {
    %c0_i32 = arith.constant 0 : i32
    %c0_i32_0 = arith.constant 0 : i32
    %c0_i32_1 = arith.constant 0 : i32
    return %c0_i32, %c0_i32_0 : i32, i32
  }
  func.func @transform_3(%arg0: i32) -> (i32, i32, i32) {
    %c0_i32 = arith.constant 0 : i32
    %c0_i32_0 = arith.constant 0 : i32
    %c0_i32_1 = arith.constant 0 : i32
    return %arg0, %c0_i32, %c0_i32_0 : i32, i32, i32
  }
}

</mosaic_0001>

<llo_original>
// kernel: tpu_custom_call.1
$region0: #{tpu_custom_call.1}
  #allocation0 [shape = 'u32[]', space=smem, size = 0x4, offset = 0x4, fixed_abs, tag = 'smem constant byte address 0x4 - core index']
  #allocation1 [shape = 'u32[144,128]{1,0:T(1,128)}', space=vmem, size = 0x12000, scoped, tag = 'internal scratch']
  %s0 = inlined_call_operand.hbm [shape: f32[2,8,2048], index: 0, kind: input, shape index: {}]
  %s1 = inlined_call_operand.vmem [shape: f32[8,24], index: 1, kind: input, shape index: {}]
  %s2 = inlined_call_operand.vmem [shape: f32[8,1], index: 2, kind: input, shape index: {}]
  %s3 = inlined_call_operand.hbm [shape: f32[16,8,128], index: 3, kind: output, shape index: {}]
  %s4 = sld [smem:[#allocation0]]
  $region26: #{tpu_custom_call.1} parent=0
    _
  %s6 = ssub.s32 1, %s4
  %s7 = scalar_select 0, %s6, %s4
  $region1: #{tpu_custom_call.1} parent=0
    #allocation2 [shape = 'u8[131072]{0}', space=vmem, size = 0x20000, scoped, tag = 'input window, operand 0, single buffered']
    #allocation3 [shape = 's32[1]{0}', space=sflag, size = 0x4, scoped, tag = 'scoped memory for tpu_custom_call.1']
    #allocation4 [shape = 's32[1]{0}', space=sflag, size = 0x4, scoped, tag = 'scoped memory for tpu_custom_call.1']
    #allocation5 [shape = 'u8[65536]{0}', space=vmem, size = 0x10000, scoped, tag = 'output window, operand 0, single buffered']
    %8 = vsyncpa [#allocation3], 0
    %9 = vsyncpa [#allocation4], 0
    // Predicated region
    $region2: #{tpu_custom_call.1} parent=1 // pred_check
      _
    $region3: #{tpu_custom_call.1} parent=1 // pred_check_branch
      %11 = sbr.rel (0) target = $region5
    $region4: #{tpu_custom_call.1} parent=1 // pred_region
      %s13 = ssub.s32 4096, 4096
      %14 = vsyncadd [#allocation3], %s13
      %s15 = sshll.u32 [#allocation2], 4
      %s16 = int_to_ptr.vmem [resolvable:$true] %s15
      %21 = dma.hbm_to_vmem [thread:$0]  %s0, 4096, %s16, [#allocation3], 2048, 2048, 128
    $region5: #{tpu_custom_call.1} parent=1 // pred_fallthru
      _
    // Predicated region
    $region6: #{tpu_custom_call.1} parent=1 // pred_check
      _
    $region7: #{tpu_custom_call.1} parent=1 // pred_check_branch
      %23 = sbr.rel (0) target = $region9
    $region8: #{tpu_custom_call.1} parent=1 // pred_region
      _
    $region9: #{tpu_custom_call.1} parent=1 // pred_fallthru
      _
    // Predicated region
    $region10: #{tpu_custom_call.1} parent=1 // pred_check
      _
    $region11: #{tpu_custom_call.1} parent=1 // pred_check_branch
      %25 = sbr.rel (0) target = $region13
    $region12: #{tpu_custom_call.1} parent=1 // pred_region
      _
    $region13: #{tpu_custom_call.1} parent=1 // pred_fallthru
      _
    // Predicated region
    $region14: #{tpu_custom_call.1} parent=1 // pred_check
      _
    $region15: #{tpu_custom_call.1} parent=1 // pred_check_branch
      %27 = sbr.rel (0) target = $region17
    $region16: #{tpu_custom_call.1} parent=1 // pred_region
      %28 = dma.done [#allocation3], 4096
    $region17: #{tpu_custom_call.1} parent=1 // pred_fallthru
      _
    %v29 = vlaneseq
    %v30 = vand.u32 %v29, 127
    %v31 = vadd.s32 %v30, 128
    %v32 = vadd.s32 %v30, 256
    %v33 = vadd.s32 %v30, 384
    %v34 = vadd.s32 %v30, 512
    %v35 = vadd.s32 %v30, 640
    %v36 = vadd.s32 %v30, 768
    %v37 = vadd.s32 %v30, 896
    %v38 = vadd.s32 %v30, 1024
    %v39 = vadd.s32 %v30, 1152
    %v40 = vadd.s32 %v30, 1280
    %v41 = vadd.s32 %v30, 1408
    %v42 = vadd.s32 %v30, 1536
    %v43 = vadd.s32 %v30, 1664
    %v44 = vadd.s32 %v30, 1792
    %v45 = vadd.s32 %v30, 1920
    %vm46 = vcmp.lt.s32.totalorder %v30, 0
    %v47 = vsub.s32 0, %v30
    %v48 = vsel %vm46, %v47, %v30
    %v49 = vshrl.u32 %v48, 7
    %v50 = vand.u32 %v48, 127
    %v51 = vsub.s32 0, %v50
    %v52 = vsel %vm46, %v51, %v50
    %vm53 = vcmp.lt.s32.totalorder %v31, 0
    %v54 = vsub.s32 0, %v31
    %v55 = vsel %vm53, %v54, %v31
    %v56 = vshrl.u32 %v55, 7
    %v57 = vand.u32 %v55, 127
    %v58 = vsub.s32 0, %v57
    %v59 = vsel %vm53, %v58, %v57
    %vm60 = vcmp.lt.s32.totalorder %v32, 0
    %v61 = vsub.s32 0, %v32
    %v62 = vsel %vm60, %v61, %v32
    %v63 = vshrl.u32 %v62, 7
    %v64 = vand.u32 %v62, 127
    %v65 = vsub.s32 0, %v64
    %v66 = vsel %vm60, %v65, %v64
    %vm67 = vcmp.lt.s32.totalorder %v33, 0
    %v68 = vsub.s32 0, %v33
    %v69 = vsel %vm67, %v68, %v33
    %v70 = vshrl.u32 %v69, 7
    %v71 = vand.u32 %v69, 127
    %v72 = vsub.s32 0, %v71
    %v73 = vsel %vm67, %v72, %v71
    %vm74 = vcmp.lt.s32.totalorder %v34, 0
    %v75 = vsub.s32 0, %v34
    %v76 = vsel %vm74, %v75, %v34
    %v77 = vshrl.u32 %v76, 7
    %v78 = vand.u32 %v76, 127
    %v79 = vsub.s32 0, %v78
    %v80 = vsel %vm74, %v79, %v78
    %vm81 = vcmp.lt.s32.totalorder %v35, 0
    %v82 = vsub.s32 0, %v35
    %v83 = vsel %vm81, %v82, %v35
    %v84 = vshrl.u32 %v83, 7
    %v85 = vand.u32 %v83, 127
    %v86 = vsub.s32 0, %v85
    %v87 = vsel %vm81, %v86, %v85
    %vm88 = vcmp.lt.s32.totalorder %v36, 0
    %v89 = vsub.s32 0, %v36
    %v90 = vsel %vm88, %v89, %v36
    %v91 = vshrl.u32 %v90, 7
    %v92 = vand.u32 %v90, 127
    %v93 = vsub.s32 0, %v92
    %v94 = vsel %vm88, %v93, %v92
    %vm95 = vcmp.lt.s32.totalorder %v37, 0
    %v96 = vsub.s32 0, %v37
    %v97 = vsel %vm95, %v96, %v37
    %v98 = vshrl.u32 %v97, 7
    %v99 = vand.u32 %v97, 127
    %v100 = vsub.s32 0, %v99
    %v101 = vsel %vm95, %v100, %v99
    %vm102 = vcmp.lt.s32.totalorder %v38, 0
    %v103 = vsub.s32 0, %v38
    %v104 = vsel %vm102, %v103, %v38
    %v105 = vshrl.u32 %v104, 7
    %v106 = vand.u32 %v104, 127
    %v107 = vsub.s32 0, %v106
    %v108 = vsel %vm102, %v107, %v106
    %vm109 = vcmp.lt.s32.totalorder %v39, 0
    %v110 = vsub.s32 0, %v39
    %v111 = vsel %vm109, %v110, %v39
    %v112 = vshrl.u32 %v111, 7
    %v113 = vand.u32 %v111, 127
    %v114 = vsub.s32 0, %v113
    %v115 = vsel %vm109, %v114, %v113
    %vm116 = vcmp.lt.s32.totalorder %v40, 0
    %v117 = vsub.s32 0, %v40
    %v118 = vsel %vm116, %v117, %v40
    %v119 = vshrl.u32 %v118, 7
    %v120 = vand.u32 %v118, 127
    %v121 = vsub.s32 0, %v120
    %v122 = vsel %vm116, %v121, %v120
    %vm123 = vcmp.lt.s32.totalorder %v41, 0
    %v124 = vsub.s32 0, %v41
    %v125 = vsel %vm123, %v124, %v41
    %v126 = vshrl.u32 %v125, 7
    %v127 = vand.u32 %v125, 127
    %v128 = vsub.s32 0, %v127
    %v129 = vsel %vm123, %v128, %v127
    %vm130 = vcmp.lt.s32.totalorder %v42, 0
    %v131 = vsub.s32 0, %v42
    %v132 = vsel %vm130, %v131, %v42
    %v133 = vshrl.u32 %v132, 7
    %v134 = vand.u32 %v132, 127
    %v135 = vsub.s32 0, %v134
    %v136 = vsel %vm130, %v135, %v134
    %vm137 = vcmp.lt.s32.totalorder %v43, 0
    %v138 = vsub.s32 0, %v43
    %v139 = vsel %vm137, %v138, %v43
    %v140 = vshrl.u32 %v139, 7
    %v141 = vand.u32 %v139, 127
    %v142 = vsub.s32 0, %v141
    %v143 = vsel %vm137, %v142, %v141
    %vm144 = vcmp.lt.s32.totalorder %v44, 0
    %v145 = vsub.s32 0, %v44
    %v146 = vsel %vm144, %v145, %v44
    %v147 = vshrl.u32 %v146, 7
    %v148 = vand.u32 %v146, 127
    %v149 = vsub.s32 0, %v148
    %v150 = vsel %vm144, %v149, %v148
    %vm151 = vcmp.lt.s32.totalorder %v45, 0
    %v152 = vsub.s32 0, %v45
    %v153 = vsel %vm151, %v152, %v45
    %v154 = vshrl.u32 %v153, 7
    %v155 = vand.u32 %v153, 127
    %v156 = vsub.s32 0, %v155
    %v157 = vsel %vm151, %v156, %v155
    %vm158 = vcmp.ne.s32.totalorder %v52, 0
    %vm159 = vcmp.ne.s32.totalorder %v59, 0
    %vm160 = vcmp.ne.s32.totalorder %v66, 0
    %vm161 = vcmp.ne.s32.totalorder %v73, 0
    %vm162 = vcmp.ne.s32.totalorder %v80, 0
    %vm163 = vcmp.ne.s32.totalorder %v87, 0
    %vm164 = vcmp.ne.s32.totalorder %v94, 0
    %vm165 = vcmp.ne.s32.totalorder %v101, 0
    %vm166 = vcmp.ne.s32.totalorder %v108, 0
    %vm167 = vcmp.ne.s32.totalorder %v115, 0
    %vm168 = vcmp.ne.s32.totalorder %v122, 0
    %vm169 = vcmp.ne.s32.totalorder %v129, 0
    %vm170 = vcmp.ne.s32.totalorder %v136, 0
    %vm171 = vcmp.ne.s32.totalorder %v143, 0
    %vm172 = vcmp.ne.s32.totalorder %v150, 0
    %vm173 = vcmp.ne.s32.totalorder %v157, 0
    %vm174 = vcmp.lt.s32.totalorder %v52, 0
    %vm175 = vcmp.lt.s32.totalorder %v59, 0
    %vm176 = vcmp.lt.s32.totalorder %v66, 0
    %vm177 = vcmp.lt.s32.totalorder %v73, 0
    %vm178 = vcmp.lt.s32.totalorder %v80, 0
    %vm179 = vcmp.lt.s32.totalorder %v87, 0
    %vm180 = vcmp.lt.s32.totalorder %v94, 0
    %vm181 = vcmp.lt.s32.totalorder %v101, 0
    %vm182 = vcmp.lt.s32.totalorder %v108, 0
    %vm183 = vcmp.lt.s32.totalorder %v115, 0
    %vm184 = vcmp.lt.s32.totalorder %v122, 0
    %vm185 = vcmp.lt.s32.totalorder %v129, 0
    %vm186 = vcmp.lt.s32.totalorder %v136, 0
    %vm187 = vcmp.lt.s32.totalorder %v143, 0
    %vm188 = vcmp.lt.s32.totalorder %v150, 0
    %vm189 = vcmp.lt.s32.totalorder %v157, 0
    %vm190 = vmand %vm174, %vm158
    %vm191 = vmand %vm175, %vm159
    %vm192 = vmand %vm176, %vm160
    %vm193 = vmand %vm177, %vm161
    %vm194 = vmand %vm178, %vm162
    %vm195 = vmand %vm179, %vm163
    %vm196 = vmand %vm180, %vm164
    %vm197 = vmand %vm181, %vm165
    %vm198 = vmand %vm182, %vm166
    %vm199 = vmand %vm183, %vm167
    %vm200 = vmand %vm184, %vm168
    %vm201 = vmand %vm185, %vm169
    %vm202 = vmand %vm186, %vm170
    %vm203 = vmand %vm187, %vm171
    %vm204 = vmand %vm188, %vm172
    %vm205 = vmand %vm189, %vm173
    %v206 = vadd.s32 %v52, 128
    %v207 = vadd.s32 %v59, 128
    %v208 = vadd.s32 %v66, 128
    %v209 = vadd.s32 %v73, 128
    %v210 = vadd.s32 %v80, 128
    %v211 = vadd.s32 %v87, 128
    %v212 = vadd.s32 %v94, 128
    %v213 = vadd.s32 %v101, 128
    %v214 = vadd.s32 %v108, 128
    %v215 = vadd.s32 %v115, 128
    %v216 = vadd.s32 %v122, 128
    %v217 = vadd.s32 %v129, 128
    %v218 = vadd.s32 %v136, 128
    %v219 = vadd.s32 %v143, 128
    %v220 = vadd.s32 %v150, 128
    %v221 = vadd.s32 %v157, 128
    %v222 = vsel %vm190, %v206, %v52
    %v223 = vsel %vm191, %v207, %v59
    %v224 = vsel %vm192, %v208, %v66
    %v225 = vsel %vm193, %v209, %v73
    %v226 = vsel %vm194, %v210, %v80
    %v227 = vsel %vm195, %v211, %v87
    %v228 = vsel %vm196, %v212, %v94
    %v229 = vsel %vm197, %v213, %v101
    %v230 = vsel %vm198, %v214, %v108
    %v231 = vsel %vm199, %v215, %v115
    %v232 = vsel %vm200, %v216, %v122
    %v233 = vsel %vm201, %v217, %v129
    %v234 = vsel %vm202, %v218, %v136
    %v235 = vsel %vm203, %v219, %v143
    %v236 = vsel %vm204, %v220, %v150
    %v237 = vsel %vm205, %v221, %v157
    %v238 = vld [vmem:[#allocation2] sm:$0xff]
    %v239 = vld [vmem:[#allocation2 + $0x8] sm:$0xff]
    %v240 = vld [vmem:[#allocation2 + $0x10] sm:$0xff]
    %v241 = vld [vmem:[#allocation2 + $0x18] sm:$0xff]
    %v242 = vld [vmem:[#allocation2 + $0x20] sm:$0xff]
    %v243 = vld [vmem:[#allocation2 + $0x28] sm:$0xff]
    %v244 = vld [vmem:[#allocation2 + $0x30] sm:$0xff]
    %v245 = vld [vmem:[#allocation2 + $0x38] sm:$0xff]
    %v246 = vld [vmem:[#allocation2 + $0x40] sm:$0xff]
    %v247 = vld [vmem:[#allocation2 + $0x48] sm:$0xff]
    %v248 = vld [vmem:[#allocation2 + $0x50] sm:$0xff]
    %v249 = vld [vmem:[#allocation2 + $0x58] sm:$0xff]
    %v250 = vld [vmem:[#allocation2 + $0x60] sm:$0xff]
    %v251 = vld [vmem:[#allocation2 + $0x68] sm:$0xff]
    %v252 = vld [vmem:[#allocation2 + $0x70] sm:$0xff]
    %v253 = vld [vmem:[#allocation2 + $0x78] sm:$0xff]
    %s254 = scalar_lea.vmem [#allocation2], 128
    %v255 = vld [vmem:[%s254] sm:$0xff]
    %v256 = vld [vmem:[%s254 + $0x8] sm:$0xff]
    %v257 = vld [vmem:[%s254 + $0x10] sm:$0xff]
    %v258 = vld [vmem:[%s254 + $0x18] sm:$0xff]
    %v259 = vld [vmem:[%s254 + $0x20] sm:$0xff]
    %v260 = vld [vmem:[%s254 + $0x28] sm:$0xff]
    %v261 = vld [vmem:[%s254 + $0x30] sm:$0xff]
    %v262 = vld [vmem:[%s254 + $0x38] sm:$0xff]
    %v263 = vld [vmem:[%s254 + $0x40] sm:$0xff]
    %v264 = vld [vmem:[%s254 + $0x48] sm:$0xff]
    %v265 = vld [vmem:[%s254 + $0x50] sm:$0xff]
    %v266 = vld [vmem:[%s254 + $0x58] sm:$0xff]
    %v267 = vld [vmem:[%s254 + $0x60] sm:$0xff]
    %v268 = vld [vmem:[%s254 + $0x68] sm:$0xff]
    %v269 = vld [vmem:[%s254 + $0x70] sm:$0xff]
    %v270 = vld [vmem:[%s254 + $0x78] sm:$0xff]
    %271 = vrot.lane.b32.xlu0 %v255, 1
    %v272 = vpop.permute.xlu0 %271
    %273 = vrot.lane.b32.xlu0 %v256, 1
    %v274 = vpop.permute.xlu0 %273
    %275 = vrot.lane.b32.xlu0 %v257, 1
    %v276 = vpop.permute.xlu0 %275
    %277 = vrot.lane.b32.xlu0 %v258, 1
    %v278 = vpop.permute.xlu0 %277
    %279 = vrot.lane.b32.xlu0 %v259, 1
    %v280 = vpop.permute.xlu0 %279
    %281 = vrot.lane.b32.xlu0 %v260, 1
    %v282 = vpop.permute.xlu0 %281
    %283 = vrot.lane.b32.xlu0 %v261, 1
    %v284 = vpop.permute.xlu0 %283
    %285 = vrot.lane.b32.xlu0 %v262, 1
    %v286 = vpop.permute.xlu0 %285
    %287 = vrot.lane.b32.xlu0 %v263, 1
    %v288 = vpop.permute.xlu0 %287
    %289 = vrot.lane.b32.xlu0 %v264, 1
    %v290 = vpop.permute.xlu0 %289
    %291 = vrot.lane.b32.xlu0 %v265, 1
    %v292 = vpop.permute.xlu0 %291
    %293 = vrot.lane.b32.xlu0 %v266, 1
    %v294 = vpop.permute.xlu0 %293
    %295 = vrot.lane.b32.xlu0 %v267, 1
    %v296 = vpop.permute.xlu0 %295
    %297 = vrot.lane.b32.xlu0 %v268, 1
    %v298 = vpop.permute.xlu0 %297
    %299 = vrot.lane.b32.xlu0 %v269, 1
    %v300 = vpop.permute.xlu0 %299
    %301 = vrot.lane.b32.xlu0 %v270, 1
    %v302 = vpop.permute.xlu0 %301
    %vm303 = vcmp.lt.s32.totalorder %v30, 1
    %v304 = vsel %vm303, %v300, %v302
    %v305 = vsel %vm303, %v298, %v300
    %v306 = vsel %vm303, %v296, %v298
    %v307 = vsel %vm303, %v294, %v296
    %v308 = vsel %vm303, %v292, %v294
    %v309 = vsel %vm303, %v290, %v292
    %v310 = vsel %vm303, %v288, %v290
    %v311 = vsel %vm303, %v286, %v288
    %v312 = vsel %vm303, %v284, %v286
    %v313 = vsel %vm303, %v282, %v284
    %v314 = vsel %vm303, %v280, %v282
    %v315 = vsel %vm303, %v278, %v280
    %v316 = vsel %vm303, %v276, %v278
    %v317 = vsel %vm303, %v274, %v276
    %v318 = vsel %vm303, %v272, %v274
    %v319 = vsel %vm303, %v302, %v272
    %vm320 = vcmp.lt.s32.totalorder %v222, 1
    %vm321 = vcmp.lt.s32.totalorder %v223, 1
    %vm322 = vcmp.lt.s32.totalorder %v224, 1
    %vm323 = vcmp.lt.s32.totalorder %v225, 1
    %vm324 = vcmp.lt.s32.totalorder %v226, 1
    %vm325 = vcmp.lt.s32.totalorder %v227, 1
    %vm326 = vcmp.lt.s32.totalorder %v228, 1
    %vm327 = vcmp.lt.s32.totalorder %v229, 1
    %vm328 = vcmp.lt.s32.totalorder %v230, 1
    %vm329 = vcmp.lt.s32.totalorder %v231, 1
    %vm330 = vcmp.lt.s32.totalorder %v232, 1
    %vm331 = vcmp.lt.s32.totalorder %v233, 1
    %vm332 = vcmp.lt.s32.totalorder %v234, 1
    %vm333 = vcmp.lt.s32.totalorder %v235, 1
    %vm334 = vcmp.lt.s32.totalorder %v236, 1
    %vm335 = vcmp.lt.s32.totalorder %v237, 1
    %v336 = vsel %vm320, -inf, %v319
    %v337 = vsel %vm321, -inf, %v318
    %v338 = vsel %vm322, -inf, %v317
    %v339 = vsel %vm323, -inf, %v316
    %v340 = vsel %vm324, -inf, %v315
    %v341 = vsel %vm325, -inf, %v314
    %v342 = vsel %vm326, -inf, %v313
    %v343 = vsel %vm327, -inf, %v312
    %v344 = vsel %vm328, -inf, %v311
    %v345 = vsel %vm329, -inf, %v310
    %v346 = vsel %vm330, -inf, %v309
    %v347 = vsel %vm331, -inf, %v308
    %v348 = vsel %vm332, -inf, %v307
    %v349 = vsel %vm333, -inf, %v306
    %v350 = vsel %vm334, -inf, %v305
    %v351 = vsel %vm335, -inf, %v304
    %v352 = vmax.f32 %v336, %v238
    %v353 = vmax.f32 %v337, %v239
    %v354 = vmax.f32 %v338, %v240
    %v355 = vmax.f32 %v339, %v241
    %v356 = vmax.f32 %v340, %v242
    %v357 = vmax.f32 %v341, %v243
    %v358 = vmax.f32 %v342, %v244
    %v359 = vmax.f32 %v343, %v245
    %v360 = vmax.f32 %v344, %v246
    %v361 = vmax.f32 %v345, %v247
    %v362 = vmax.f32 %v346, %v248
    %v363 = vmax.f32 %v347, %v249
    %v364 = vmax.f32 %v348, %v250
    %v365 = vmax.f32 %v349, %v251
    %v366 = vmax.f32 %v350, %v252
    %v367 = vmax.f32 %v351, %v253
    %v368 = vmax.f32 %v352, %v255
    %v369 = vmax.f32 %v353, %v256
    %v370 = vmax.f32 %v354, %v257
    %v371 = vmax.f32 %v355, %v258
    %v372 = vmax.f32 %v356, %v259
    %v373 = vmax.f32 %v357, %v260
    %v374 = vmax.f32 %v358, %v261
    %v375 = vmax.f32 %v359, %v262
    %v376 = vmax.f32 %v360, %v263
    %v377 = vmax.f32 %v361, %v264
    %v378 = vmax.f32 %v362, %v265
    %v379 = vmax.f32 %v363, %v266
    %v380 = vmax.f32 %v364, %v267
    %v381 = vmax.f32 %v365, %v268
    %v382 = vmax.f32 %v366, %v269
    %v383 = vmax.f32 %v367, %v270
    %v384 = vld [vmem:[%s1] sm:$0xff]
    %v385 = vld [vmem:[%s2] sm:$0xff]
    %387 = vset.pattern.permute.xlu0 0
    %388 = vperm.xlu0 %387, %v385
    %v389 = vpop.permute.xlu0 %388
    %v391 = vmax.f32 %v368, 0.0
    %v392 = vmax.f32 %v369, 0.0
    %v393 = vmax.f32 %v370, 0.0
    %v394 = vmax.f32 %v371, 0.0
    %v395 = vmax.f32 %v372, 0.0
    %v396 = vmax.f32 %v373, 0.0
    %v397 = vmax.f32 %v374, 0.0
    %v398 = vmax.f32 %v375, 0.0
    %v399 = vmax.f32 %v376, 0.0
    %v400 = vmax.f32 %v377, 0.0
    %v401 = vmax.f32 %v378, 0.0
    %v402 = vmax.f32 %v379, 0.0
    %v403 = vmax.f32 %v380, 0.0
    %v404 = vmax.f32 %v381, 0.0
    %v405 = vmax.f32 %v382, 0.0
    %v406 = vmax.f32 %v383, 0.0
    %407 = vrot.lane.b32.xlu0 %v391, 1
    %v408 = vpop.permute.xlu0 %407
    %409 = vrot.lane.b32.xlu0 %v392, 1
    %v410 = vpop.permute.xlu0 %409
    %411 = vrot.lane.b32.xlu0 %v393, 1
    %v412 = vpop.permute.xlu0 %411
    %413 = vrot.lane.b32.xlu0 %v394, 1
    %v414 = vpop.permute.xlu0 %413
    %415 = vrot.lane.b32.xlu0 %v395, 1
    %v416 = vpop.permute.xlu0 %415
    %417 = vrot.lane.b32.xlu0 %v396, 1
    %v418 = vpop.permute.xlu0 %417
    %419 = vrot.lane.b32.xlu0 %v397, 1
    %v420 = vpop.permute.xlu0 %419
    %421 = vrot.lane.b32.xlu0 %v398, 1
    %v422 = vpop.permute.xlu0 %421
    %423 = vrot.lane.b32.xlu0 %v399, 1
    %v424 = vpop.permute.xlu0 %423
    %425 = vrot.lane.b32.xlu0 %v400, 1
    %v426 = vpop.permute.xlu0 %425
    %427 = vrot.lane.b32.xlu0 %v401, 1
    %v428 = vpop.permute.xlu0 %427
    %429 = vrot.lane.b32.xlu0 %v402, 1
    %v430 = vpop.permute.xlu0 %429
    %431 = vrot.lane.b32.xlu0 %v403, 1
    %v432 = vpop.permute.xlu0 %431
    %433 = vrot.lane.b32.xlu0 %v404, 1
    %v434 = vpop.permute.xlu0 %433
    %435 = vrot.lane.b32.xlu0 %v405, 1
    %v436 = vpop.permute.xlu0 %435
    %437 = vrot.lane.b32.xlu0 %v406, 1
    %v438 = vpop.permute.xlu0 %437
    %v439 = vsel %vm303, %v436, %v438
    %v440 = vsel %vm303, %v434, %v436
    %v441 = vsel %vm303, %v432, %v434
    %v442 = vsel %vm303, %v430, %v432
    %v443 = vsel %vm303, %v428, %v430
    %v444 = vsel %vm303, %v426, %v428
    %v445 = vsel %vm303, %v424, %v426
    %v446 = vsel %vm303, %v422, %v424
    %v447 = vsel %vm303, %v420, %v422
    %v448 = vsel %vm303, %v418, %v420
    %v449 = vsel %vm303, %v416, %v418
    %v450 = vsel %vm303, %v414, %v416
    %v451 = vsel %vm303, %v412, %v414
    %v452 = vsel %vm303, %v410, %v412
    %v453 = vsel %vm303, %v408, %v410
    %v454 = vsel %vm303, %v438, %v408
    %v455 = vsel %vm320, 0.0, %v454
    %v456 = vsel %vm321, 0.0, %v453
    %v457 = vsel %vm322, 0.0, %v452
    %v458 = vsel %vm323, 0.0, %v451
    %v459 = vsel %vm324, 0.0, %v450
    %v460 = vsel %vm325, 0.0, %v449
    %v461 = vsel %vm326, 0.0, %v448
    %v462 = vsel %vm327, 0.0, %v447
    %v463 = vsel %vm328, 0.0, %v446
    %v464 = vsel %vm329, 0.0, %v445
    %v465 = vsel %vm330, 0.0, %v444
    %v466 = vsel %vm331, 0.0, %v443
    %v467 = vsel %vm332, 0.0, %v442
    %v468 = vsel %vm333, 0.0, %v441
    %v469 = vsel %vm334, 0.0, %v440
    %v470 = vsel %vm335, 0.0, %v439
    %471 = vrot.lane.b32.xlu0 %v391, 127
    %v472 = vpop.permute.xlu0 %471
    %473 = vrot.lane.b32.xlu0 %v392, 127
    %v474 = vpop.permute.xlu0 %473
    %475 = vrot.lane.b32.xlu0 %v393, 127
    %v476 = vpop.permute.xlu0 %475
    %477 = vrot.lane.b32.xlu0 %v394, 127
    %v478 = vpop.permute.xlu0 %477
    %479 = vrot.lane.b32.xlu0 %v395, 127
    %v480 = vpop.permute.xlu0 %479
    %481 = vrot.lane.b32.xlu0 %v396, 127
    %v482 = vpop.permute.xlu0 %481
    %483 = vrot.lane.b32.xlu0 %v397, 127
    %v484 = vpop.permute.xlu0 %483
    %485 = vrot.lane.b32.xlu0 %v398, 127
    %v486 = vpop.permute.xlu0 %485
    %487 = vrot.lane.b32.xlu0 %v399, 127
    %v488 = vpop.permute.xlu0 %487
    %489 = vrot.lane.b32.xlu0 %v400, 127
    %v490 = vpop.permute.xlu0 %489
    %491 = vrot.lane.b32.xlu0 %v401, 127
    %v492 = vpop.permute.xlu0 %491
    %493 = vrot.lane.b32.xlu0 %v402, 127
    %v494 = vpop.permute.xlu0 %493
    %495 = vrot.lane.b32.xlu0 %v403, 127
    %v496 = vpop.permute.xlu0 %495
    %497 = vrot.lane.b32.xlu0 %v404, 127
    %v498 = vpop.permute.xlu0 %497
    %499 = vrot.lane.b32.xlu0 %v405, 127
    %v500 = vpop.permute.xlu0 %499
    %501 = vrot.lane.b32.xlu0 %v406, 127
    %v502 = vpop.permute.xlu0 %501
    %vm503 = vcmp.lt.s32.totalorder %v30, 127
    %v504 = vsel %vm503, %v500, %v502
    %v505 = vsel %vm503, %v498, %v500
    %v506 = vsel %vm503, %v496, %v498
    %v507 = vsel %vm503, %v494, %v496
    %v508 = vsel %vm503, %v492, %v494
    %v509 = vsel %vm503, %v490, %v492
    %v510 = vsel %vm503, %v488, %v490
    %v511 = vsel %vm503, %v486, %v488
    %v512 = vsel %vm503, %v484, %v486
    %v513 = vsel %vm503, %v482, %v484
    %v514 = vsel %vm503, %v480, %v482
    %v515 = vsel %vm503, %v478, %v480
    %v516 = vsel %vm503, %v476, %v478
    %v517 = vsel %vm503, %v474, %v476
    %v518 = vsel %vm503, %v472, %v474
    %v519 = vsel %vm503, %v502, %v472
    %vm520 = vcmp.ge.s32.totalorder %v222, 127
    %vm521 = vcmp.ge.s32.totalorder %v223, 127
    %vm522 = vcmp.ge.s32.totalorder %v224, 127
    %vm523 = vcmp.ge.s32.totalorder %v225, 127
    %vm524 = vcmp.ge.s32.totalorder %v226, 127
    %vm525 = vcmp.ge.s32.totalorder %v227, 127
    %vm526 = vcmp.ge.s32.totalorder %v228, 127
    %vm527 = vcmp.ge.s32.totalorder %v229, 127
    %vm528 = vcmp.ge.s32.totalorder %v230, 127
    %vm529 = vcmp.ge.s32.totalorder %v231, 127
    %vm530 = vcmp.ge.s32.totalorder %v232, 127
    %vm531 = vcmp.ge.s32.totalorder %v233, 127
    %vm532 = vcmp.ge.s32.totalorder %v234, 127
    %vm533 = vcmp.ge.s32.totalorder %v235, 127
    %vm534 = vcmp.ge.s32.totalorder %v236, 127
    %vm535 = vcmp.ge.s32.totalorder %v237, 127
    %v536 = vsel %vm520, 0.0, %v518
    %v537 = vsel %vm521, 0.0, %v517
    %v538 = vsel %vm522, 0.0, %v516
    %v539 = vsel %vm523, 0.0, %v515
    %v540 = vsel %vm524, 0.0, %v514
    %v541 = vsel %vm525, 0.0, %v513
    %v542 = vsel %vm526, 0.0, %v512
    %v543 = vsel %vm527, 0.0, %v511
    %v544 = vsel %vm528, 0.0, %v510
    %v545 = vsel %vm529, 0.0, %v509
    %v546 = vsel %vm530, 0.0, %v508
    %v547 = vsel %vm531, 0.0, %v507
    %v548 = vsel %vm532, 0.0, %v506
    %v549 = vsel %vm533, 0.0, %v505
    %v550 = vsel %vm534, 0.0, %v504
    %v551 = vsel %vm535, 0.0, %v519
    %vm552 = vcmask 195584
    %v554 = vsel %vm552, %v384, 0
    %556 = vmatprep.subr.mxu0 %v456
    %557 = vmatpush1.msra.mxu0 %v455
    %558 = vmatprep.subr.mxu0 %v392
    %559 = vmatpush1.msra.mxu0 %v391
    %560 = vmatprep.subr.mxu0 %v537
    %561 = vmatpush1.msra.mxu0 %v536
    %562 = vmatprep.subr.mxu0 0.0
    %563 = vmatpush1.msra.mxu0 0.0
    %564 = vmatprep.subr.mxu0 0.0
    %565 = vmatpush1.msra.mxu0 0.0
    %566 = vmatprep.subr.mxu0 0.0
    %567 = vmatpush1.msra.mxu0 0.0
    %568 = vmatprep.subr.mxu0 0.0
    %569 = vmatpush1.msra.mxu0 0.0
    %570 = vmatprep.subr.mxu0 0.0
    %571 = vmatpush1.msra.mxu0 0.0
    %572 = vmatprep.subr.mxu0 0.0
    %573 = vmatpush1.msra.mxu0 0.0
    %574 = vmatprep.subr.mxu0 0.0
    %575 = vmatpush1.msra.mxu0 0.0
    %576 = vmatprep.subr.mxu0 0.0
    %577 = vmatpush1.msra.mxu0 0.0
    %578 = vmatprep.subr.mxu0 0.0
    %579 = vmatpush1.msra.mxu0 0.0
    %580 = vmatprep.subr.mxu0 0.0
    %581 = vmatpush1.msra.mxu0 0.0
    %582 = vmatprep.subr.mxu0 0.0
    %583 = vmatpush1.msra.mxu0 0.0
    %584 = vmatprep.subr.mxu0 0.0
    %585 = vmatpush1.msra.mxu0 0.0
    %586 = vmatprep.subr.mxu0 0.0
    %587 = vmatpush1.msra.mxu0 0.0
    %588 = vmatprep.subr.mxu0 0.0
    %589 = vmatpush1.msra.mxu0 0.0
    %590 = vmatprep.subr.mxu0 0.0
    %591 = vmatpush1.msra.mxu0 0.0
    %592 = vmatprep.subr.mxu0 0.0
    %593 = vmatpush1.msra.mxu0 0.0
    %594 = vmatprep.subr.mxu0 0.0
    %595 = vmatpush1.msra.mxu0 0.0
    %596 = vmatprep.subr.mxu0 0.0
    %597 = vmatpush1.msra.mxu0 0.0
    %598 = vmatprep.subr.mxu0 0.0
    %599 = vmatpush1.msra.mxu0 0.0
    %600 = vmatprep.subr.mxu0 0.0
    %601 = vmatpush1.msra.mxu0 0.0
    %602 = vmatprep.subr.mxu0 0.0
    %603 = vmatpush1.msra.mxu0 0.0
    %604 = vmatprep.subr.mxu0 0.0
    %605 = vmatpush1.msra.mxu0 0.0
    %606 = vmatprep.subr.mxu0 0.0
    %607 = vmatpush1.msra.mxu0 0.0
    %608 = vmatprep.subr.mxu0 0.0
    %609 = vmatpush1.msra.mxu0 0.0
    %610 = vmatprep.subr.mxu0 0.0
    %611 = vmatpush1.msra.mxu0 0.0
    %612 = vmatprep.subr.mxu0 0.0
    %613 = vmatpush1.msra.mxu0 0.0
    %614 = vmatprep.subr.mxu0 0.0
    %615 = vmatpush1.msra.mxu0 0.0
    %616 = vmatprep.subr.mxu0 0.0
    %617 = vmatpush1.msra.mxu0 0.0
    %618 = vmatprep.subr.mxu0 0.0
    %619 = vmatpush1.msra.mxu0 0.0
    %620 = vmatprep.mubr.f32.mxu0 0.0
    %621 = vmatmul.mubr.f32.gmra.mrb[0].mxu0 %v554
    %v622 = vpop.f32.mrb[0].mxu0
    %v623 = vadd.f32 %v389, %v622
    %v624 = vpop.f32.mrb[0].mxu0
    %v625 = vadd.f32 %v389, %v624
    %626 = vdwg.mxu0
    %627 = vmatprep.subr.mxu0 %v458
    %628 = vmatpush1.msra.mxu0 %v457
    %629 = vmatprep.subr.mxu0 %v394
    %630 = vmatpush1.msra.mxu0 %v393
    %631 = vmatprep.subr.mxu0 %v539
    %632 = vmatpush1.msra.mxu0 %v538
    %633 = vmatprep.subr.mxu0 0.0
    %634 = vmatpush1.msra.mxu0 0.0
    %635 = vmatprep.subr.mxu0 0.0
    %636 = vmatpush1.msra.mxu0 0.0
    %637 = vmatprep.subr.mxu0 0.0
    %638 = vmatpush1.msra.mxu0 0.0
    %639 = vmatprep.subr.mxu0 0.0
    %640 = vmatpush1.msra.mxu0 0.0
    %641 = vmatprep.subr.mxu0 0.0
    %642 = vmatpush1.msra.mxu0 0.0
    %643 = vmatprep.subr.mxu0 0.0
    %644 = vmatpush1.msra.mxu0 0.0
    %645 = vmatprep.subr.mxu0 0.0
    %646 = vmatpush1.msra.mxu0 0.0
    %647 = vmatprep.subr.mxu0 0.0
    %648 = vmatpush1.msra.mxu0 0.0
    %649 = vmatprep.subr.mxu0 0.0
    %650 = vmatpush1.msra.mxu0 0.0
    %651 = vmatprep.subr.mxu0 0.0
    %652 = vmatpush1.msra.mxu0 0.0
    %653 = vmatprep.subr.mxu0 0.0
    %654 = vmatpush1.msra.mxu0 0.0
    %655 = vmatprep.subr.mxu0 0.0
    %656 = vmatpush1.msra.mxu0 0.0
    %657 = vmatprep.subr.mxu0 0.0
    %658 = vmatpush1.msra.mxu0 0.0
    %659 = vmatprep.subr.mxu0 0.0
    %660 = vmatpush1.msra.mxu0 0.0
    %661 = vmatprep.subr.mxu0 0.0
    %662 = vmatpush1.msra.mxu0 0.0
    %663 = vmatprep.subr.mxu0 0.0
    %664 = vmatpush1.msra.mxu0 0.0
    %665 = vmatprep.subr.mxu0 0.0
    %666 = vmatpush1.msra.mxu0 0.0
    %667 = vmatprep.subr.mxu0 0.0
    %668 = vmatpush1.msra.mxu0 0.0
    %669 = vmatprep.subr.mxu0 0.0
    %670 = vmatpush1.msra.mxu0 0.0
    %671 = vmatprep.subr.mxu0 0.0
    %672 = vmatpush1.msra.mxu0 0.0
    %673 = vmatprep.subr.mxu0 0.0
    %674 = vmatpush1.msra.mxu0 0.0
    %675 = vmatprep.subr.mxu0 0.0
    %676 = vmatpush1.msra.mxu0 0.0
    %677 = vmatprep.subr.mxu0 0.0
    %678 = vmatpush1.msra.mxu0 0.0
    %679 = vmatprep.subr.mxu0 0.0
    %680 = vmatpush1.msra.mxu0 0.0
    %681 = vmatprep.subr.mxu0 0.0
    %682 = vmatpush1.msra.mxu0 0.0
    %683 = vmatprep.subr.mxu0 0.0
    %684 = vmatpush1.msra.mxu0 0.0
    %685 = vmatprep.subr.mxu0 0.0
    %686 = vmatpush1.msra.mxu0 0.0
    %687 = vmatprep.subr.mxu0 0.0
    %688 = vmatpush1.msra.mxu0 0.0
    %689 = vmatprep.subr.mxu0 0.0
    %690 = vmatpush1.msra.mxu0 0.0
    %691 = vmatprep.mubr.f32.mxu0 0.0
    %692 = vmatmul.mubr.f32.gmra.mrb[0].mxu0 %v554
    %v693 = vpop.f32.mrb[0].mxu0
    %v694 = vadd.f32 %v389, %v693
    %v695 = vpop.f32.mrb[0].mxu0
    %v696 = vadd.f32 %v389, %v695
    %697 = vdwg.mxu0
    %698 = vmatprep.subr.mxu0 %v460
    %699 = vmatpush1.msra.mxu0 %v459
    %700 = vmatprep.subr.mxu0 %v396
    %701 = vmatpush1.msra.mxu0 %v395
    %702 = vmatprep.subr.mxu0 %v541
    %703 = vmatpush1.msra.mxu0 %v540
    %704 = vmatprep.subr.mxu0 0.0
    %705 = vmatpush1.msra.mxu0 0.0
    %706 = vmatprep.subr.mxu0 0.0
    %707 = vmatpush1.msra.mxu0 0.0
    %708 = vmatprep.subr.mxu0 0.0
    %709 = vmatpush1.msra.mxu0 0.0
    %710 = vmatprep.subr.mxu0 0.0
    %711 = vmatpush1.msra.mxu0 0.0
    %712 = vmatprep.subr.mxu0 0.0
    %713 = vmatpush1.msra.mxu0 0.0
    %714 = vmatprep.subr.mxu0 0.0
    %715 = vmatpush1.msra.mxu0 0.0
    %716 = vmatprep.subr.mxu0 0.0
    %717 = vmatpush1.msra.mxu0 0.0
    %718 = vmatprep.subr.mxu0 0.0
    %719 = vmatpush1.msra.mxu0 0.0
    %720 = vmatprep.subr.mxu0 0.0
    %721 = vmatpush1.msra.mxu0 0.0
    %722 = vmatprep.subr.mxu0 0.0
    %723 = vmatpush1.msra.mxu0 0.0
    %724 = vmatprep.subr.mxu0 0.0
    %725 = vmatpush1.msra.mxu0 0.0
    %726 = vmatprep.subr.mxu0 0.0
    %727 = vmatpush1.msra.mxu0 0.0
    %728 = vmatprep.subr.mxu0 0.0
    %729 = vmatpush1.msra.mxu0 0.0
    %730 = vmatprep.subr.mxu0 0.0
    %731 = vmatpush1.msra.mxu0 0.0
    %732 = vmatprep.subr.mxu0 0.0
    %733 = vmatpush1.msra.mxu0 0.0
    %734 = vmatprep.subr.mxu0 0.0
    %735 = vmatpush1.msra.mxu0 0.0
    %736 = vmatprep.subr.mxu0 0.0
    %737 = vmatpush1.msra.mxu0 0.0
    %738 = vmatprep.subr.mxu0 0.0
    %739 = vmatpush1.msra.mxu0 0.0
    %740 = vmatprep.subr.mxu0 0.0
    %741 = vmatpush1.msra.mxu0 0.0
    %742 = vmatprep.subr.mxu0 0.0
    %743 = vmatpush1.msra.mxu0 0.0
    %744 = vmatprep.subr.mxu0 0.0
    %745 = vmatpush1.msra.mxu0 0.0
    %746 = vmatprep.subr.mxu0 0.0
    %747 = vmatpush1.msra.mxu0 0.0
    %748 = vmatprep.subr.mxu0 0.0
    %749 = vmatpush1.msra.mxu0 0.0
    %750 = vmatprep.subr.mxu0 0.0
    %751 = vmatpush1.msra.mxu0 0.0
    %752 = vmatprep.subr.mxu0 0.0
    %753 = vmatpush1.msra.mxu0 0.0
    %754 = vmatprep.subr.mxu0 0.0
    %755 = vmatpush1.msra.mxu0 0.0
    %756 = vmatprep.subr.mxu0 0.0
    %757 = vmatpush1.msra.mxu0 0.0
    %758 = vmatprep.subr.mxu0 0.0
    %759 = vmatpush1.msra.mxu0 0.0
    %760 = vmatprep.subr.mxu0 0.0
    %761 = vmatpush1.msra.mxu0 0.0
    %762 = vmatprep.mubr.f32.mxu0 0.0
    %763 = vmatmul.mubr.f32.gmra.mrb[0].mxu0 %v554
    %v764 = vpop.f32.mrb[0].mxu0
    %v765 = vadd.f32 %v389, %v764
    %v766 = vpop.f32.mrb[0].mxu0
    %v767 = vadd.f32 %v389, %v766
    %768 = vdwg.mxu0
    %769 = vmatprep.subr.mxu0 %v462
    %770 = vmatpush1.msra.mxu0 %v461
    %771 = vmatprep.subr.mxu0 %v398
    %772 = vmatpush1.msra.mxu0 %v397
    %773 = vmatprep.subr.mxu0 %v543
    %774 = vmatpush1.msra.mxu0 %v542
    %775 = vmatprep.subr.mxu0 0.0
    %776 = vmatpush1.msra.mxu0 0.0
    %777 = vmatprep.subr.mxu0 0.0
    %778 = vmatpush1.msra.mxu0 0.0
    %779 = vmatprep.subr.mxu0 0.0
    %780 = vmatpush1.msra.mxu0 0.0
    %781 = vmatprep.subr.mxu0 0.0
    %782 = vmatpush1.msra.mxu0 0.0
    %783 = vmatprep.subr.mxu0 0.0
    %784 = vmatpush1.msra.mxu0 0.0
    %785 = vmatprep.subr.mxu0 0.0
    %786 = vmatpush1.msra.mxu0 0.0
    %787 = vmatprep.subr.mxu0 0.0
    %788 = vmatpush1.msra.mxu0 0.0
    %789 = vmatprep.subr.mxu0 0.0
    %790 = vmatpush1.msra.mxu0 0.0
    %791 = vmatprep.subr.mxu0 0.0
    %792 = vmatpush1.msra.mxu0 0.0
    %793 = vmatprep.subr.mxu0 0.0
    %794 = vmatpush1.msra.mxu0 0.0
    %795 = vmatprep.subr.mxu0 0.0
    %796 = vmatpush1.msra.mxu0 0.0
    %797 = vmatprep.subr.mxu0 0.0
    %798 = vmatpush1.msra.mxu0 0.0
    %799 = vmatprep.subr.mxu0 0.0
    %800 = vmatpush1.msra.mxu0 0.0
    %801 = vmatprep.subr.mxu0 0.0
    %802 = vmatpush1.msra.mxu0 0.0
    %803 = vmatprep.subr.mxu0 0.0
    %804 = vmatpush1.msra.mxu0 0.0
    %805 = vmatprep.subr.mxu0 0.0
    %806 = vmatpush1.msra.mxu0 0.0
    %807 = vmatprep.subr.mxu0 0.0
    %808 = vmatpush1.msra.mxu0 0.0
    %809 = vmatprep.subr.mxu0 0.0
    %810 = vmatpush1.msra.mxu0 0.0
    %811 = vmatprep.subr.mxu0 0.0
    %812 = vmatpush1.msra.mxu0 0.0
    %813 = vmatprep.subr.mxu0 0.0
    %814 = vmatpush1.msra.mxu0 0.0
    %815 = vmatprep.subr.mxu0 0.0
    %816 = vmatpush1.msra.mxu0 0.0
    %817 = vmatprep.subr.mxu0 0.0
    %818 = vmatpush1.msra.mxu0 0.0
    %819 = vmatprep.subr.mxu0 0.0
    %820 = vmatpush1.msra.mxu0 0.0
    %821 = vmatprep.subr.mxu0 0.0
    %822 = vmatpush1.msra.mxu0 0.0
    %823 = vmatprep.subr.mxu0 0.0
    %824 = vmatpush1.msra.mxu0 0.0
    %825 = vmatprep.subr.mxu0 0.0
    %826 = vmatpush1.msra.mxu0 0.0
    %827 = vmatprep.subr.mxu0 0.0
    %828 = vmatpush1.msra.mxu0 0.0
    %829 = vmatprep.subr.mxu0 0.0
    %830 = vmatpush1.msra.mxu0 0.0
    %831 = vmatprep.subr.mxu0 0.0
    %832 = vmatpush1.msra.mxu0 0.0
    %833 = vmatprep.mubr.f32.mxu0 0.0
    %834 = vmatmul.mubr.f32.gmra.mrb[0].mxu0 %v554
    %v835 = vpop.f32.mrb[0].mxu0
    %v836 = vadd.f32 %v389, %v835
    %v837 = vpop.f32.mrb[0].mxu0
    %v838 = vadd.f32 %v389, %v837
    %839 = vdwg.mxu0
    %840 = vmatprep.subr.mxu0 %v464
    %841 = vmatpush1.msra.mxu0 %v463
    %842 = vmatprep.subr.mxu0 %v400
    %843 = vmatpush1.msra.mxu0 %v399
    %844 = vmatprep.subr.mxu0 %v545
    %845 = vmatpush1.msra.mxu0 %v544
    %846 = vmatprep.subr.mxu0 0.0
    %847 = vmatpush1.msra.mxu0 0.0
    %848 = vmatprep.subr.mxu0 0.0
    %849 = vmatpush1.msra.mxu0 0.0
    %850 = vmatprep.subr.mxu0 0.0
    %851 = vmatpush1.msra.mxu0 0.0
    %852 = vmatprep.subr.mxu0 0.0
    %853 = vmatpush1.msra.mxu0 0.0
    %854 = vmatprep.subr.mxu0 0.0
    %855 = vmatpush1.msra.mxu0 0.0
    %856 = vmatprep.subr.mxu0 0.0
    %857 = vmatpush1.msra.mxu0 0.0
    %858 = vmatprep.subr.mxu0 0.0
    %859 = vmatpush1.msra.mxu0 0.0
    %860 = vmatprep.subr.mxu0 0.0
    %861 = vmatpush1.msra.mxu0 0.0
    %862 = vmatprep.subr.mxu0 0.0
    %863 = vmatpush1.msra.mxu0 0.0
    %864 = vmatprep.subr.mxu0 0.0
    %865 = vmatpush1.msra.mxu0 0.0
    %866 = vmatprep.subr.mxu0 0.0
    %867 = vmatpush1.msra.mxu0 0.0
    %868 = vmatprep.subr.mxu0 0.0
    %869 = vmatpush1.msra.mxu0 0.0
    %870 = vmatprep.subr.mxu0 0.0
    %871 = vmatpush1.msra.mxu0 0.0
    %872 = vmatprep.subr.mxu0 0.0
    %873 = vmatpush1.msra.mxu0 0.0
    %874 = vmatprep.subr.mxu0 0.0
    %875 = vmatpush1.msra.mxu0 0.0
    %876 = vmatprep.subr.mxu0 0.0
    %877 = vmatpush1.msra.mxu0 0.0
    %878 = vmatprep.subr.mxu0 0.0
    %879 = vmatpush1.msra.mxu0 0.0
    %880 = vmatprep.subr.mxu0 0.0
    %881 = vmatpush1.msra.mxu0 0.0
    %882 = vmatprep.subr.mxu0 0.0
    %883 = vmatpush1.msra.mxu0 0.0
    %884 = vmatprep.subr.mxu0 0.0
    %885 = vmatpush1.msra.mxu0 0.0
    %886 = vmatprep.subr.mxu0 0.0
    %887 = vmatpush1.msra.mxu0 0.0
    %888 = vmatprep.subr.mxu0 0.0
    %889 = vmatpush1.msra.mxu0 0.0
    %890 = vmatprep.subr.mxu0 0.0
    %891 = vmatpush1.msra.mxu0 0.0
    %892 = vmatprep.subr.mxu0 0.0
    %893 = vmatpush1.msra.mxu0 0.0
    %894 = vmatprep.subr.mxu0 0.0
    %895 = vmatpush1.msra.mxu0 0.0
    %896 = vmatprep.subr.mxu0 0.0
    %897 = vmatpush1.msra.mxu0 0.0
    %898 = vmatprep.subr.mxu0 0.0
    %899 = vmatpush1.msra.mxu0 0.0
    %900 = vmatprep.subr.mxu0 0.0
    %901 = vmatpush1.msra.mxu0 0.0
    %902 = vmatprep.subr.mxu0 0.0
    %903 = vmatpush1.msra.mxu0 0.0
    %904 = vmatprep.mubr.f32.mxu0 0.0
    %905 = vmatmul.mubr.f32.gmra.mrb[0].mxu0 %v554
    %v906 = vpop.f32.mrb[0].mxu0
    %v907 = vadd.f32 %v389, %v906
    %v908 = vpop.f32.mrb[0].mxu0
    %v909 = vadd.f32 %v389, %v908
    %910 = vdwg.mxu0
    %911 = vmatprep.subr.mxu0 %v466
    %912 = vmatpush1.msra.mxu0 %v465
    %913 = vmatprep.subr.mxu0 %v402
    %914 = vmatpush1.msra.mxu0 %v401
    %915 = vmatprep.subr.mxu0 %v547
    %916 = vmatpush1.msra.mxu0 %v546
    %917 = vmatprep.subr.mxu0 0.0
    %918 = vmatpush1.msra.mxu0 0.0
    %919 = vmatprep.subr.mxu0 0.0
    %920 = vmatpush1.msra.mxu0 0.0
    %921 = vmatprep.subr.mxu0 0.0
    %922 = vmatpush1.msra.mxu0 0.0
    %923 = vmatprep.subr.mxu0 0.0
    %924 = vmatpush1.msra.mxu0 0.0
    %925 = vmatprep.subr.mxu0 0.0
    %926 = vmatpush1.msra.mxu0 0.0
    %927 = vmatprep.subr.mxu0 0.0
    %928 = vmatpush1.msra.mxu0 0.0
    %929 = vmatprep.subr.mxu0 0.0
    %930 = vmatpush1.msra.mxu0 0.0
    %931 = vmatprep.subr.mxu0 0.0
    %932 = vmatpush1.msra.mxu0 0.0
    %933 = vmatprep.subr.mxu0 0.0
    %934 = vmatpush1.msra.mxu0 0.0
    %935 = vmatprep.subr.mxu0 0.0
    %936 = vmatpush1.msra.mxu0 0.0
    %937 = vmatprep.subr.mxu0 0.0
    %938 = vmatpush1.msra.mxu0 0.0
    %939 = vmatprep.subr.mxu0 0.0
    %940 = vmatpush1.msra.mxu0 0.0
    %941 = vmatprep.subr.mxu0 0.0
    %942 = vmatpush1.msra.mxu0 0.0
    %943 = vmatprep.subr.mxu0 0.0
    %944 = vmatpush1.msra.mxu0 0.0
    %945 = vmatprep.subr.mxu0 0.0
    %946 = vmatpush1.msra.mxu0 0.0
    %947 = vmatprep.subr.mxu0 0.0
    %948 = vmatpush1.msra.mxu0 0.0
    %949 = vmatprep.subr.mxu0 0.0
    %950 = vmatpush1.msra.mxu0 0.0
    %951 = vmatprep.subr.mxu0 0.0
    %952 = vmatpush1.msra.mxu0 0.0
    %953 = vmatprep.subr.mxu0 0.0
    %954 = vmatpush1.msra.mxu0 0.0
    %955 = vmatprep.subr.mxu0 0.0
    %956 = vmatpush1.msra.mxu0 0.0
    %957 = vmatprep.subr.mxu0 0.0
    %958 = vmatpush1.msra.mxu0 0.0
    %959 = vmatprep.subr.mxu0 0.0
    %960 = vmatpush1.msra.mxu0 0.0
    %961 = vmatprep.subr.mxu0 0.0
    %962 = vmatpush1.msra.mxu0 0.0
    %963 = vmatprep.subr.mxu0 0.0
    %964 = vmatpush1.msra.mxu0 0.0
    %965 = vmatprep.subr.mxu0 0.0
    %966 = vmatpush1.msra.mxu0 0.0
    %967 = vmatprep.subr.mxu0 0.0
    %968 = vmatpush1.msra.mxu0 0.0
    %969 = vmatprep.subr.mxu0 0.0
    %970 = vmatpush1.msra.mxu0 0.0
    %971 = vmatprep.subr.mxu0 0.0
    %972 = vmatpush1.msra.mxu0 0.0
    %973 = vmatprep.subr.mxu0 0.0
    %974 = vmatpush1.msra.mxu0 0.0
    %975 = vmatprep.mubr.f32.mxu0 0.0
    %976 = vmatmul.mubr.f32.gmra.mrb[0].mxu0 %v554
    %v977 = vpop.f32.mrb[0].mxu0
    %v978 = vadd.f32 %v389, %v977
    %v979 = vpop.f32.mrb[0].mxu0
    %v980 = vadd.f32 %v389, %v979
    %981 = vdwg.mxu0
    %982 = vmatprep.subr.mxu0 %v468
    %983 = vmatpush1.msra.mxu0 %v467
    %984 = vmatprep.subr.mxu0 %v404
    %985 = vmatpush1.msra.mxu0 %v403
    %986 = vmatprep.subr.mxu0 %v549
    %987 = vmatpush1.msra.mxu0 %v548
    %988 = vmatprep.subr.mxu0 0.0
    %989 = vmatpush1.msra.mxu0 0.0
    %990 = vmatprep.subr.mxu0 0.0
    %991 = vmatpush1.msra.mxu0 0.0
    %992 = vmatprep.subr.mxu0 0.0
    %993 = vmatpush1.msra.mxu0 0.0
    %994 = vmatprep.subr.mxu0 0.0
    %995 = vmatpush1.msra.mxu0 0.0
    %996 = vmatprep.subr.mxu0 0.0
    %997 = vmatpush1.msra.mxu0 0.0
    %998 = vmatprep.subr.mxu0 0.0
    %999 = vmatpush1.msra.mxu0 0.0
    %1000 = vmatprep.subr.mxu0 0.0
    %1001 = vmatpush1.msra.mxu0 0.0
    %1002 = vmatprep.subr.mxu0 0.0
    %1003 = vmatpush1.msra.mxu0 0.0
    %1004 = vmatprep.subr.mxu0 0.0
    %1005 = vmatpush1.msra.mxu0 0.0
    %1006 = vmatprep.subr.mxu0 0.0
    %1007 = vmatpush1.msra.mxu0 0.0
    %1008 = vmatprep.subr.mxu0 0.0
    %1009 = vmatpush1.msra.mxu0 0.0
    %1010 = vmatprep.subr.mxu0 0.0
    %1011 = vmatpush1.msra.mxu0 0.0
    %1012 = vmatprep.subr.mxu0 0.0
    %1013 = vmatpush1.msra.mxu0 0.0
    %1014 = vmatprep.subr.mxu0 0.0
    %1015 = vmatpush1.msra.mxu0 0.0
    %1016 = vmatprep.subr.mxu0 0.0
    %1017 = vmatpush1.msra.mxu0 0.0
    %1018 = vmatprep.subr.mxu0 0.0
    %1019 = vmatpush1.msra.mxu0 0.0
    %1020 = vmatprep.subr.mxu0 0.0
    %1021 = vmatpush1.msra.mxu0 0.0
    %1022 = vmatprep.subr.mxu0 0.0
    %1023 = vmatpush1.msra.mxu0 0.0
    %1024 = vmatprep.subr.mxu0 0.0
    %1025 = vmatpush1.msra.mxu0 0.0
    %1026 = vmatprep.subr.mxu0 0.0
    %1027 = vmatpush1.msra.mxu0 0.0
    %1028 = vmatprep.subr.mxu0 0.0
    %1029 = vmatpush1.msra.mxu0 0.0
    %1030 = vmatprep.subr.mxu0 0.0
    %1031 = vmatpush1.msra.mxu0 0.0
    %1032 = vmatprep.subr.mxu0 0.0
    %1033 = vmatpush1.msra.mxu0 0.0
    %1034 = vmatprep.subr.mxu0 0.0
    %1035 = vmatpush1.msra.mxu0 0.0
    %1036 = vmatprep.subr.mxu0 0.0
    %1037 = vmatpush1.msra.mxu0 0.0
    %1038 = vmatprep.subr.mxu0 0.0
    %1039 = vmatpush1.msra.mxu0 0.0
    %1040 = vmatprep.subr.mxu0 0.0
    %1041 = vmatpush1.msra.mxu0 0.0
    %1042 = vmatprep.subr.mxu0 0.0
    %1043 = vmatpush1.msra.mxu0 0.0
    %1044 = vmatprep.subr.mxu0 0.0
    %1045 = vmatpush1.msra.mxu0 0.0
    %1046 = vmatprep.mubr.f32.mxu0 0.0
    %1047 = vmatmul.mubr.f32.gmra.mrb[0].mxu0 %v554
    %v1048 = vpop.f32.mrb[0].mxu0
    %v1049 = vadd.f32 %v389, %v1048
    %v1050 = vpop.f32.mrb[0].mxu0
    %v1051 = vadd.f32 %v389, %v1050
    %1052 = vdwg.mxu0
    %1053 = vmatprep.subr.mxu0 %v470
    %1054 = vmatpush1.msra.mxu0 %v469
    %1055 = vmatprep.subr.mxu0 %v406
    %1056 = vmatpush1.msra.mxu0 %v405
    %1057 = vmatprep.subr.mxu0 %v551
    %1058 = vmatpush1.msra.mxu0 %v550
    %1059 = vmatprep.subr.mxu0 0.0
    %1060 = vmatpush1.msra.mxu0 0.0
    %1061 = vmatprep.subr.mxu0 0.0
    %1062 = vmatpush1.msra.mxu0 0.0
    %1063 = vmatprep.subr.mxu0 0.0
    %1064 = vmatpush1.msra.mxu0 0.0
    %1065 = vmatprep.subr.mxu0 0.0
    %1066 = vmatpush1.msra.mxu0 0.0
    %1067 = vmatprep.subr.mxu0 0.0
    %1068 = vmatpush1.msra.mxu0 0.0
    %1069 = vmatprep.subr.mxu0 0.0
    %1070 = vmatpush1.msra.mxu0 0.0
    %1071 = vmatprep.subr.mxu0 0.0
    %1072 = vmatpush1.msra.mxu0 0.0
    %1073 = vmatprep.subr.mxu0 0.0
    %1074 = vmatpush1.msra.mxu0 0.0
    %1075 = vmatprep.subr.mxu0 0.0
    %1076 = vmatpush1.msra.mxu0 0.0
    %1077 = vmatprep.subr.mxu0 0.0
    %1078 = vmatpush1.msra.mxu0 0.0
    %1079 = vmatprep.subr.mxu0 0.0
    %1080 = vmatpush1.msra.mxu0 0.0
    %1081 = vmatprep.subr.mxu0 0.0
    %1082 = vmatpush1.msra.mxu0 0.0
    %1083 = vmatprep.subr.mxu0 0.0
    %1084 = vmatpush1.msra.mxu0 0.0
    %1085 = vmatprep.subr.mxu0 0.0
    %1086 = vmatpush1.msra.mxu0 0.0
    %1087 = vmatprep.subr.mxu0 0.0
    %1088 = vmatpush1.msra.mxu0 0.0
    %1089 = vmatprep.subr.mxu0 0.0
    %1090 = vmatpush1.msra.mxu0 0.0
    %1091 = vmatprep.subr.mxu0 0.0
    %1092 = vmatpush1.msra.mxu0 0.0
    %1093 = vmatprep.subr.mxu0 0.0
    %1094 = vmatpush1.msra.mxu0 0.0
    %1095 = vmatprep.subr.mxu0 0.0
    %1096 = vmatpush1.msra.mxu0 0.0
    %1097 = vmatprep.subr.mxu0 0.0
    %1098 = vmatpush1.msra.mxu0 0.0
    %1099 = vmatprep.subr.mxu0 0.0
    %1100 = vmatpush1.msra.mxu0 0.0
    %1101 = vmatprep.subr.mxu0 0.0
    %1102 = vmatpush1.msra.mxu0 0.0
    %1103 = vmatprep.subr.mxu0 0.0
    %1104 = vmatpush1.msra.mxu0 0.0
    %1105 = vmatprep.subr.mxu0 0.0
    %1106 = vmatpush1.msra.mxu0 0.0
    %1107 = vmatprep.subr.mxu0 0.0
    %1108 = vmatpush1.msra.mxu0 0.0
    %1109 = vmatprep.subr.mxu0 0.0
    %1110 = vmatpush1.msra.mxu0 0.0
    %1111 = vmatprep.subr.mxu0 0.0
    %1112 = vmatpush1.msra.mxu0 0.0
    %1113 = vmatprep.subr.mxu0 0.0
    %1114 = vmatpush1.msra.mxu0 0.0
    %1115 = vmatprep.subr.mxu0 0.0
    %1116 = vmatpush1.msra.mxu0 0.0
    %1117 = vmatprep.mubr.f32.mxu0 0.0
    %1118 = vmatmul.mubr.f32.gmra.mrb[0].mxu0 %v554
    %v1119 = vpop.f32.mrb[0].mxu0
    %v1120 = vadd.f32 %v389, %v1119
    %v1121 = vpop.f32.mrb[0].mxu0
    %v1122 = vadd.f32 %v389, %v1121
    %1123 = vdwg.mxu0
    %v1124 = vmax.f32 %v623, 0.0
    %v1125 = vmax.f32 %v625, 0.0
    %v1126 = vmax.f32 %v694, 0.0
    %v1127 = vmax.f32 %v696, 0.0
    %v1128 = vmax.f32 %v765, 0.0
    %v1129 = vmax.f32 %v767, 0.0
    %v1130 = vmax.f32 %v836, 0.0
    %v1131 = vmax.f32 %v838, 0.0
    %v1132 = vmax.f32 %v907, 0.0
    %v1133 = vmax.f32 %v909, 0.0
    %v1134 = vmax.f32 %v978, 0.0
    %v1135 = vmax.f32 %v980, 0.0
    %v1136 = vmax.f32 %v1049, 0.0
    %v1137 = vmax.f32 %v1051, 0.0
    %v1138 = vmax.f32 %v1120, 0.0
    %v1139 = vmax.f32 %v1122, 0.0
    %1140 = vrot.lane.b32.xlu0 %v1124, 1
    %v1141 = vpop.permute.xlu0 %1140
    %1142 = vrot.lane.b32.xlu0 %v1125, 1
    %v1143 = vpop.permute.xlu0 %1142
    %1144 = vrot.lane.b32.xlu0 %v1126, 1
    %v1145 = vpop.permute.xlu0 %1144
    %1146 = vrot.lane.b32.xlu0 %v1127, 1
    %v1147 = vpop.permute.xlu0 %1146
    %1148 = vrot.lane.b32.xlu0 %v1128, 1
    %v1149 = vpop.permute.xlu0 %1148
    %1150 = vrot.lane.b32.xlu0 %v1129, 1
    %v1151 = vpop.permute.xlu0 %1150
    %1152 = vrot.lane.b32.xlu0 %v1130, 1
    %v1153 = vpop.permute.xlu0 %1152
    %1154 = vrot.lane.b32.xlu0 %v1131, 1
    %v1155 = vpop.permute.xlu0 %1154
    %1156 = vrot.lane.b32.xlu0 %v1132, 1
    %v1157 = vpop.permute.xlu0 %1156
    %1158 = vrot.lane.b32.xlu0 %v1133, 1
    %v1159 = vpop.permute.xlu0 %1158
    %1160 = vrot.lane.b32.xlu0 %v1134, 1
    %v1161 = vpop.permute.xlu0 %1160
    %1162 = vrot.lane.b32.xlu0 %v1135, 1
    %v1163 = vpop.permute.xlu0 %1162
    %1164 = vrot.lane.b32.xlu0 %v1136, 1
    %v1165 = vpop.permute.xlu0 %1164
    %1166 = vrot.lane.b32.xlu0 %v1137, 1
    %v1167 = vpop.permute.xlu0 %1166
    %1168 = vrot.lane.b32.xlu0 %v1138, 1
    %v1169 = vpop.permute.xlu0 %1168
    %1170 = vrot.lane.b32.xlu0 %v1139, 1
    %v1171 = vpop.permute.xlu0 %1170
    %v1172 = vsel %vm303, %v1169, %v1171
    %v1173 = vsel %vm303, %v1167, %v1169
    %v1174 = vsel %vm303, %v1165, %v1167
    %v1175 = vsel %vm303, %v1163, %v1165
    %v1176 = vsel %vm303, %v1161, %v1163
    %v1177 = vsel %vm303, %v1159, %v1161
    %v1178 = vsel %vm303, %v1157, %v1159
    %v1179 = vsel %vm303, %v1155, %v1157
    %v1180 = vsel %vm303, %v1153, %v1155
    %v1181 = vsel %vm303, %v1151, %v1153
    %v1182 = vsel %vm303, %v1149, %v1151
    %v1183 = vsel %vm303, %v1147, %v1149
    %v1184 = vsel %vm303, %v1145, %v1147
    %v1185 = vsel %vm303, %v1143, %v1145
    %v1186 = vsel %vm303, %v1141, %v1143
    %v1187 = vsel %vm303, %v1171, %v1141
    %v1188 = vsel %vm320, 0.0, %v1187
    %v1189 = vsel %vm321, 0.0, %v1186
    %v1190 = vsel %vm322, 0.0, %v1185
    %v1191 = vsel %vm323, 0.0, %v1184
    %v1192 = vsel %vm324, 0.0, %v1183
    %v1193 = vsel %vm325, 0.0, %v1182
    %v1194 = vsel %vm326, 0.0, %v1181
    %v1195 = vsel %vm327, 0.0, %v1180
    %v1196 = vsel %vm328, 0.0, %v1179
    %v1197 = vsel %vm329, 0.0, %v1178
    %v1198 = vsel %vm330, 0.0, %v1177
    %v1199 = vsel %vm331, 0.0, %v1176
    %v1200 = vsel %vm332, 0.0, %v1175
    %v1201 = vsel %vm333, 0.0, %v1174
    %v1202 = vsel %vm334, 0.0, %v1173
    %v1203 = vsel %vm335, 0.0, %v1172
    %1204 = vrot.lane.b32.xlu0 %v1124, 127
    %v1205 = vpop.permute.xlu0 %1204
    %1206 = vrot.lane.b32.xlu0 %v1125, 127
    %v1207 = vpop.permute.xlu0 %1206
    %1208 = vrot.lane.b32.xlu0 %v1126, 127
    %v1209 = vpop.permute.xlu0 %1208
    %1210 = vrot.lane.b32.xlu0 %v1127, 127
    %v1211 = vpop.permute.xlu0 %1210
    %1212 = vrot.lane.b32.xlu0 %v1128, 127
    %v1213 = vpop.permute.xlu0 %1212
    %1214 = vrot.lane.b32.xlu0 %v1129, 127
    %v1215 = vpop.permute.xlu0 %1214
    %1216 = vrot.lane.b32.xlu0 %v1130, 127
    %v1217 = vpop.permute.xlu0 %1216
    %1218 = vrot.lane.b32.xlu0 %v1131, 127
    %v1219 = vpop.permute.xlu0 %1218
    %1220 = vrot.lane.b32.xlu0 %v1132, 127
    %v1221 = vpop.permute.xlu0 %1220
    %1222 = vrot.lane.b32.xlu0 %v1133, 127
    %v1223 = vpop.permute.xlu0 %1222
    %1224 = vrot.lane.b32.xlu0 %v1134, 127
    %v1225 = vpop.permute.xlu0 %1224
    %1226 = vrot.lane.b32.xlu0 %v1135, 127
    %v1227 = vpop.permute.xlu0 %1226
    %1228 = vrot.lane.b32.xlu0 %v1136, 127
    %v1229 = vpop.permute.xlu0 %1228
    %1230 = vrot.lane.b32.xlu0 %v1137, 127
    %v1231 = vpop.permute.xlu0 %1230
    %1232 = vrot.lane.b32.xlu0 %v1138, 127
    %v1233 = vpop.permute.xlu0 %1232
    %1234 = vrot.lane.b32.xlu0 %v1139, 127
    %v1235 = vpop.permute.xlu0 %1234
    %v1236 = vsel %vm503, %v1233, %v1235
    %v1237 = vsel %vm503, %v1231, %v1233
    %v1238 = vsel %vm503, %v1229, %v1231
    %v1239 = vsel %vm503, %v1227, %v1229
    %v1240 = vsel %vm503, %v1225, %v1227
    %v1241 = vsel %vm503, %v1223, %v1225
    %v1242 = vsel %vm503, %v1221, %v1223
    %v1243 = vsel %vm503, %v1219, %v1221
    %v1244 = vsel %vm503, %v1217, %v1219
    %v1245 = vsel %vm503, %v1215, %v1217
    %v1246 = vsel %vm503, %v1213, %v1215
    %v1247 = vsel %vm503, %v1211, %v1213
    %v1248 = vsel %vm503, %v1209, %v1211
    %v1249 = vsel %vm503, %v1207, %v1209
    %v1250 = vsel %vm503, %v1205, %v1207
    %v1251 = vsel %vm503, %v1235, %v1205
    %v1252 = vsel %vm520, 0.0, %v1250
    %v1253 = vsel %vm521, 0.0, %v1249
    %v1254 = vsel %vm522, 0.0, %v1248
    %v1255 = vsel %vm523, 0.0, %v1247
    %v1256 = vsel %vm524, 0.0, %v1246
    %v1257 = vsel %vm525, 0.0, %v1245
    %v1258 = vsel %vm526, 0.0, %v1244
    %v1259 = vsel %vm527, 0.0, %v1243
    %v1260 = vsel %vm528, 0.0, %v1242
    %v1261 = vsel %vm529, 0.0, %v1241
    %v1262 = vsel %vm530, 0.0, %v1240
    %v1263 = vsel %vm531, 0.0, %v1239
    %v1264 = vsel %vm532, 0.0, %v1238
    %v1265 = vsel %vm533, 0.0, %v1237
    %v1266 = vsel %vm534, 0.0, %v1236
    %v1267 = vsel %vm535, 0.0, %v1251
    %1268 = vmatprep.subr.mxu0 %v1189
    %1269 = vmatpush1.msra.mxu0 %v1188
    %1270 = vmatprep.subr.mxu0 %v1125
    %1271 = vmatpush1.msra.mxu0 %v1124
    %1272 = vmatprep.subr.mxu0 %v1253
    %1273 = vmatpush1.msra.mxu0 %v1252
    %1274 = vmatprep.subr.mxu0 0.0
    %1275 = vmatpush1.msra.mxu0 0.0
    %1276 = vmatprep.subr.mxu0 0.0
    %1277 = vmatpush1.msra.mxu0 0.0
    %1278 = vmatprep.subr.mxu0 0.0
    %1279 = vmatpush1.msra.mxu0 0.0
    %1280 = vmatprep.subr.mxu0 0.0
    %1281 = vmatpush1.msra.mxu0 0.0
    %1282 = vmatprep.subr.mxu0 0.0
    %1283 = vmatpush1.msra.mxu0 0.0
    %1284 = vmatprep.subr.mxu0 0.0
    %1285 = vmatpush1.msra.mxu0 0.0
    %1286 = vmatprep.subr.mxu0 0.0
    %1287 = vmatpush1.msra.mxu0 0.0
    %1288 = vmatprep.subr.mxu0 0.0
    %1289 = vmatpush1.msra.mxu0 0.0
    %1290 = vmatprep.subr.mxu0 0.0
    %1291 = vmatpush1.msra.mxu0 0.0
    %1292 = vmatprep.subr.mxu0 0.0
    %1293 = vmatpush1.msra.mxu0 0.0
    %1294 = vmatprep.subr.mxu0 0.0
    %1295 = vmatpush1.msra.mxu0 0.0
    %1296 = vmatprep.subr.mxu0 0.0
    %1297 = vmatpush1.msra.mxu0 0.0
    %1298 = vmatprep.subr.mxu0 0.0
    %1299 = vmatpush1.msra.mxu0 0.0
    %1300 = vmatprep.subr.mxu0 0.0
    %1301 = vmatpush1.msra.mxu0 0.0
    %1302 = vmatprep.subr.mxu0 0.0
    %1303 = vmatpush1.msra.mxu0 0.0
    %1304 = vmatprep.subr.mxu0 0.0
    %1305 = vmatpush1.msra.mxu0 0.0
    %1306 = vmatprep.subr.mxu0 0.0
    %1307 = vmatpush1.msra.mxu0 0.0
    %1308 = vmatprep.subr.mxu0 0.0
    %1309 = vmatpush1.msra.mxu0 0.0
    %1310 = vmatprep.subr.mxu0 0.0
    %1311 = vmatpush1.msra.mxu0 0.0
    %1312 = vmatprep.subr.mxu0 0.0
    %1313 = vmatpush1.msra.mxu0 0.0
    %1314 = vmatprep.subr.mxu0 0.0
    %1315 = vmatpush1.msra.mxu0 0.0
    %1316 = vmatprep.subr.mxu0 0.0
    %1317 = vmatpush1.msra.mxu0 0.0
    %1318 = vmatprep.subr.mxu0 0.0
    %1319 = vmatpush1.msra.mxu0 0.0
    %1320 = vmatprep.subr.mxu0 0.0
    %1321 = vmatpush1.msra.mxu0 0.0
    %1322 = vmatprep.subr.mxu0 0.0
    %1323 = vmatpush1.msra.mxu0 0.0
    %1324 = vmatprep.subr.mxu0 0.0
    %1325 = vmatpush1.msra.mxu0 0.0
    %1326 = vmatprep.subr.mxu0 0.0
    %1327 = vmatpush1.msra.mxu0 0.0
    %1328 = vmatprep.subr.mxu0 0.0
    %1329 = vmatpush1.msra.mxu0 0.0
    %1330 = vmatprep.subr.mxu0 0.0
    %1331 = vmatpush1.msra.mxu0 0.0
    %1332 = vmatprep.mubr.f32.mxu0 0.0
    %1333 = vmatmul.mubr.f32.gmra.mrb[0].mxu0 %v554
    %v1334 = vpop.f32.mrb[0].mxu0
    %v1335 = vadd.f32 %v389, %v1334
    %v1336 = vpop.f32.mrb[0].mxu0
    %v1337 = vadd.f32 %v389, %v1336
    %1338 = vdwg.mxu0
    %1339 = vmatprep.subr.mxu0 %v1191
    %1340 = vmatpush1.msra.mxu0 %v1190
    %1341 = vmatprep.subr.mxu0 %v1127
    %1342 = vmatpush1.msra.mxu0 %v1126
    %1343 = vmatprep.subr.mxu0 %v1255
    %1344 = vmatpush1.msra.mxu0 %v1254
    %1345 = vmatprep.subr.mxu0 0.0
    %1346 = vmatpush1.msra.mxu0 0.0
    %1347 = vmatprep.subr.mxu0 0.0
    %1348 = vmatpush1.msra.mxu0 0.0
    %1349 = vmatprep.subr.mxu0 0.0
    %1350 = vmatpush1.msra.mxu0 0.0
    %1351 = vmatprep.subr.mxu0 0.0
    %1352 = vmatpush1.msra.mxu0 0.0
    %1353 = vmatprep.subr.mxu0 0.0
    %1354 = vmatpush1.msra.mxu0 0.0
    %1355 = vmatprep.subr.mxu0 0.0
    %1356 = vmatpush1.msra.mxu0 0.0
    %1357 = vmatprep.subr.mxu0 0.0
    %1358 = vmatpush1.msra.mxu0 0.0
    %1359 = vmatprep.subr.mxu0 0.0
    %1360 = vmatpush1.msra.mxu0 0.0
    %1361 = vmatprep.subr.mxu0 0.0
    %1362 = vmatpush1.msra.mxu0 0.0
    %1363 = vmatprep.subr.mxu0 0.0
    %1364 = vmatpush1.msra.mxu0 0.0
    %1365 = vmatprep.subr.mxu0 0.0
    %1366 = vmatpush1.msra.mxu0 0.0
    %1367 = vmatprep.subr.mxu0 0.0
    %1368 = vmatpush1.msra.mxu0 0.0
    %1369 = vmatprep.subr.mxu0 0.0
    %1370 = vmatpush1.msra.mxu0 0.0
    %1371 = vmatprep.subr.mxu0 0.0
    %1372 = vmatpush1.msra.mxu0 0.0
    %1373 = vmatprep.subr.mxu0 0.0
    %1374 = vmatpush1.msra.mxu0 0.0
    %1375 = vmatprep.subr.mxu0 0.0
    %1376 = vmatpush1.msra.mxu0 0.0
    %1377 = vmatprep.subr.mxu0 0.0
    %1378 = vmatpush1.msra.mxu0 0.0
    %1379 = vmatprep.subr.mxu0 0.0
    %1380 = vmatpush1.msra.mxu0 0.0
    %1381 = vmatprep.subr.mxu0 0.0
    %1382 = vmatpush1.msra.mxu0 0.0
    %1383 = vmatprep.subr.mxu0 0.0
    %1384 = vmatpush1.msra.mxu0 0.0
    %1385 = vmatprep.subr.mxu0 0.0
    %1386 = vmatpush1.msra.mxu0 0.0
    %1387 = vmatprep.subr.mxu0 0.0
    %1388 = vmatpush1.msra.mxu0 0.0
    %1389 = vmatprep.subr.mxu0 0.0
    %1390 = vmatpush1.msra.mxu0 0.0
    %1391 = vmatprep.subr.mxu0 0.0
    %1392 = vmatpush1.msra.mxu0 0.0
    %1393 = vmatprep.subr.mxu0 0.0
    %1394 = vmatpush1.msra.mxu0 0.0
    %1395 = vmatprep.subr.mxu0 0.0
    %1396 = vmatpush1.msra.mxu0 0.0
    %1397 = vmatprep.subr.mxu0 0.0
    %1398 = vmatpush1.msra.mxu0 0.0
    %1399 = vmatprep.subr.mxu0 0.0
    %1400 = vmatpush1.msra.mxu0 0.0
    %1401 = vmatprep.subr.mxu0 0.0
    %1402 = vmatpush1.msra.mxu0 0.0
    %1403 = vmatprep.mubr.f32.mxu0 0.0
    %1404 = vmatmul.mubr.f32.gmra.mrb[0].mxu0 %v554
    %v1405 = vpop.f32.mrb[0].mxu0
    %v1406 = vadd.f32 %v389, %v1405
    %v1407 = vpop.f32.mrb[0].mxu0
    %v1408 = vadd.f32 %v389, %v1407
    %1409 = vdwg.mxu0
    %1410 = vmatprep.subr.mxu0 %v1193
    %1411 = vmatpush1.msra.mxu0 %v1192
    %1412 = vmatprep.subr.mxu0 %v1129
    %1413 = vmatpush1.msra.mxu0 %v1128
    %1414 = vmatprep.subr.mxu0 %v1257
    %1415 = vmatpush1.msra.mxu0 %v1256
    %1416 = vmatprep.subr.mxu0 0.0
    %1417 = vmatpush1.msra.mxu0 0.0
    %1418 = vmatprep.subr.mxu0 0.0
    %1419 = vmatpush1.msra.mxu0 0.0
    %1420 = vmatprep.subr.mxu0 0.0
    %1421 = vmatpush1.msra.mxu0 0.0
    %1422 = vmatprep.subr.mxu0 0.0
    %1423 = vmatpush1.msra.mxu0 0.0
    %1424 = vmatprep.subr.mxu0 0.0
    %1425 = vmatpush1.msra.mxu0 0.0
    %1426 = vmatprep.subr.mxu0 0.0
    %1427 = vmatpush1.msra.mxu0 0.0
    %1428 = vmatprep.subr.mxu0 0.0
    %1429 = vmatpush1.msra.mxu0 0.0
    %1430 = vmatprep.subr.mxu0 0.0
    %1431 = vmatpush1.msra.mxu0 0.0
    %1432 = vmatprep.subr.mxu0 0.0
    %1433 = vmatpush1.msra.mxu0 0.0
    %1434 = vmatprep.subr.mxu0 0.0
    %1435 = vmatpush1.msra.mxu0 0.0
    %1436 = vmatprep.subr.mxu0 0.0
    %1437 = vmatpush1.msra.mxu0 0.0
    %1438 = vmatprep.subr.mxu0 0.0
    %1439 = vmatpush1.msra.mxu0 0.0
    %1440 = vmatprep.subr.mxu0 0.0
    %1441 = vmatpush1.msra.mxu0 0.0
    %1442 = vmatprep.subr.mxu0 0.0
    %1443 = vmatpush1.msra.mxu0 0.0
    %1444 = vmatprep.subr.mxu0 0.0
    %1445 = vmatpush1.msra.mxu0 0.0
    %1446 = vmatprep.subr.mxu0 0.0
    %1447 = vmatpush1.msra.mxu0 0.0
    %1448 = vmatprep.subr.mxu0 0.0
    %1449 = vmatpush1.msra.mxu0 0.0
    %1450 = vmatprep.subr.mxu0 0.0
    %1451 = vmatpush1.msra.mxu0 0.0
    %1452 = vmatprep.subr.mxu0 0.0
    %1453 = vmatpush1.msra.mxu0 0.0
    %1454 = vmatprep.subr.mxu0 0.0
    %1455 = vmatpush1.msra.mxu0 0.0
    %1456 = vmatprep.subr.mxu0 0.0
    %1457 = vmatpush1.msra.mxu0 0.0
    %1458 = vmatprep.subr.mxu0 0.0
    %1459 = vmatpush1.msra.mxu0 0.0
    %1460 = vmatprep.subr.mxu0 0.0
    %1461 = vmatpush1.msra.mxu0 0.0
    %1462 = vmatprep.subr.mxu0 0.0
    %1463 = vmatpush1.msra.mxu0 0.0
    %1464 = vmatprep.subr.mxu0 0.0
    %1465 = vmatpush1.msra.mxu0 0.0
    %1466 = vmatprep.subr.mxu0 0.0
    %1467 = vmatpush1.msra.mxu0 0.0
    %1468 = vmatprep.subr.mxu0 0.0
    %1469 = vmatpush1.msra.mxu0 0.0
    %1470 = vmatprep.subr.mxu0 0.0
    %1471 = vmatpush1.msra.mxu0 0.0
    %1472 = vmatprep.subr.mxu0 0.0
    %1473 = vmatpush1.msra.mxu0 0.0
    %1474 = vmatprep.mubr.f32.mxu0 0.0
    %1475 = vmatmul.mubr.f32.gmra.mrb[0].mxu0 %v554
    %v1476 = vpop.f32.mrb[0].mxu0
    %v1477 = vadd.f32 %v389, %v1476
    %v1478 = vpop.f32.mrb[0].mxu0
    %v1479 = vadd.f32 %v389, %v1478
    %1480 = vdwg.mxu0
    %1481 = vmatprep.subr.mxu0 %v1195
    %1482 = vmatpush1.msra.mxu0 %v1194
    %1483 = vmatprep.subr.mxu0 %v1131
    %1484 = vmatpush1.msra.mxu0 %v1130
    %1485 = vmatprep.subr.mxu0 %v1259
    %1486 = vmatpush1.msra.mxu0 %v1258
    %1487 = vmatprep.subr.mxu0 0.0
    %1488 = vmatpush1.msra.mxu0 0.0
    %1489 = vmatprep.subr.mxu0 0.0
    %1490 = vmatpush1.msra.mxu0 0.0
    %1491 = vmatprep.subr.mxu0 0.0
    %1492 = vmatpush1.msra.mxu0 0.0
    %1493 = vmatprep.subr.mxu0 0.0
    %1494 = vmatpush1.msra.mxu0 0.0
    %1495 = vmatprep.subr.mxu0 0.0
    %1496 = vmatpush1.msra.mxu0 0.0
    %1497 = vmatprep.subr.mxu0 0.0
    %1498 = vmatpush1.msra.mxu0 0.0
    %1499 = vmatprep.subr.mxu0 0.0
    %1500 = vmatpush1.msra.mxu0 0.0
    %1501 = vmatprep.subr.mxu0 0.0
    %1502 = vmatpush1.msra.mxu0 0.0
    %1503 = vmatprep.subr.mxu0 0.0
    %1504 = vmatpush1.msra.mxu0 0.0
    %1505 = vmatprep.subr.mxu0 0.0
    %1506 = vmatpush1.msra.mxu0 0.0
    %1507 = vmatprep.subr.mxu0 0.0
    %1508 = vmatpush1.msra.mxu0 0.0
    %1509 = vmatprep.subr.mxu0 0.0
    %1510 = vmatpush1.msra.mxu0 0.0
    %1511 = vmatprep.subr.mxu0 0.0
    %1512 = vmatpush1.msra.mxu0 0.0
    %1513 = vmatprep.subr.mxu0 0.0
    %1514 = vmatpush1.msra.mxu0 0.0
    %1515 = vmatprep.subr.mxu0 0.0
    %1516 = vmatpush1.msra.mxu0 0.0
    %1517 = vmatprep.subr.mxu0 0.0
    %1518 = vmatpush1.msra.mxu0 0.0
    %1519 = vmatprep.subr.mxu0 0.0
    %1520 = vmatpush1.msra.mxu0 0.0
    %1521 = vmatprep.subr.mxu0 0.0
    %1522 = vmatpush1.msra.mxu0 0.0
    %1523 = vmatprep.subr.mxu0 0.0
    %1524 = vmatpush1.msra.mxu0 0.0
    %1525 = vmatprep.subr.mxu0 0.0
    %1526 = vmatpush1.msra.mxu0 0.0
    %1527 = vmatprep.subr.mxu0 0.0
    %1528 = vmatpush1.msra.mxu0 0.0
    %1529 = vmatprep.subr.mxu0 0.0
    %1530 = vmatpush1.msra.mxu0 0.0
    %1531 = vmatprep.subr.mxu0 0.0
    %1532 = vmatpush1.msra.mxu0 0.0
    %1533 = vmatprep.subr.mxu0 0.0
    %1534 = vmatpush1.msra.mxu0 0.0
    %1535 = vmatprep.subr.mxu0 0.0
    %1536 = vmatpush1.msra.mxu0 0.0
    %1537 = vmatprep.subr.mxu0 0.0
    %1538 = vmatpush1.msra.mxu0 0.0
    %1539 = vmatprep.subr.mxu0 0.0
    %1540 = vmatpush1.msra.mxu0 0.0
    %1541 = vmatprep.subr.mxu0 0.0
    %1542 = vmatpush1.msra.mxu0 0.0
    %1543 = vmatprep.subr.mxu0 0.0
    %1544 = vmatpush1.msra.mxu0 0.0
    %1545 = vmatprep.mubr.f32.mxu0 0.0
    %1546 = vmatmul.mubr.f32.gmra.mrb[0].mxu0 %v554
    %v1547 = vpop.f32.mrb[0].mxu0
    %v1548 = vadd.f32 %v389, %v1547
    %v1549 = vpop.f32.mrb[0].mxu0
    %v1550 = vadd.f32 %v389, %v1549
    %1551 = vdwg.mxu0
    %1552 = vmatprep.subr.mxu0 %v1197
    %1553 = vmatpush1.msra.mxu0 %v1196
    %1554 = vmatprep.subr.mxu0 %v1133
    %1555 = vmatpush1.msra.mxu0 %v1132
    %1556 = vmatprep.subr.mxu0 %v1261
    %1557 = vmatpush1.msra.mxu0 %v1260
    %1558 = vmatprep.subr.mxu0 0.0
    %1559 = vmatpush1.msra.mxu0 0.0
    %1560 = vmatprep.subr.mxu0 0.0
    %1561 = vmatpush1.msra.mxu0 0.0
    %1562 = vmatprep.subr.mxu0 0.0
    %1563 = vmatpush1.msra.mxu0 0.0
    %1564 = vmatprep.subr.mxu0 0.0
    %1565 = vmatpush1.msra.mxu0 0.0
    %1566 = vmatprep.subr.mxu0 0.0
    %1567 = vmatpush1.msra.mxu0 0.0
    %1568 = vmatprep.subr.mxu0 0.0
    %1569 = vmatpush1.msra.mxu0 0.0
    %1570 = vmatprep.subr.mxu0 0.0
    %1571 = vmatpush1.msra.mxu0 0.0
    %1572 = vmatprep.subr.mxu0 0.0
    %1573 = vmatpush1.msra.mxu0 0.0
    %1574 = vmatprep.subr.mxu0 0.0
    %1575 = vmatpush1.msra.mxu0 0.0
    %1576 = vmatprep.subr.mxu0 0.0
    %1577 = vmatpush1.msra.mxu0 0.0
    %1578 = vmatprep.subr.mxu0 0.0
    %1579 = vmatpush1.msra.mxu0 0.0
    %1580 = vmatprep.subr.mxu0 0.0
    %1581 = vmatpush1.msra.mxu0 0.0
    %1582 = vmatprep.subr.mxu0 0.0
    %1583 = vmatpush1.msra.mxu0 0.0
    %1584 = vmatprep.subr.mxu0 0.0
    %1585 = vmatpush1.msra.mxu0 0.0
    %1586 = vmatprep.subr.mxu0 0.0
    %1587 = vmatpush1.msra.mxu0 0.0
    %1588 = vmatprep.subr.mxu0 0.0
    %1589 = vmatpush1.msra.mxu0 0.0
    %1590 = vmatprep.subr.mxu0 0.0
    %1591 = vmatpush1.msra.mxu0 0.0
    %1592 = vmatprep.subr.mxu0 0.0
    %1593 = vmatpush1.msra.mxu0 0.0
    %1594 = vmatprep.subr.mxu0 0.0
    %1595 = vmatpush1.msra.mxu0 0.0
    %1596 = vmatprep.subr.mxu0 0.0
    %1597 = vmatpush1.msra.mxu0 0.0
    %1598 = vmatprep.subr.mxu0 0.0
    %1599 = vmatpush1.msra.mxu0 0.0
    %1600 = vmatprep.subr.mxu0 0.0
    %1601 = vmatpush1.msra.mxu0 0.0
    %1602 = vmatprep.subr.mxu0 0.0
    %1603 = vmatpush1.msra.mxu0 0.0
    %1604 = vmatprep.subr.mxu0 0.0
    %1605 = vmatpush1.msra.mxu0 0.0
    %1606 = vmatprep.subr.mxu0 0.0
    %1607 = vmatpush1.msra.mxu0 0.0
    %1608 = vmatprep.subr.mxu0 0.0
    %1609 = vmatpush1.msra.mxu0 0.0
    %1610 = vmatprep.subr.mxu0 0.0
    %1611 = vmatpush1.msra.mxu0 0.0
    %1612 = vmatprep.subr.mxu0 0.0
    %1613 = vmatpush1.msra.mxu0 0.0
    %1614 = vmatprep.subr.mxu0 0.0
    %1615 = vmatpush1.msra.mxu0 0.0
    %1616 = vmatprep.mubr.f32.mxu0 0.0
    %1617 = vmatmul.mubr.f32.gmra.mrb[0].mxu0 %v554
    %v1618 = vpop.f32.mrb[0].mxu0
    %v1619 = vadd.f32 %v389, %v1618
    %v1620 = vpop.f32.mrb[0].mxu0
    %v1621 = vadd.f32 %v389, %v1620
    %1622 = vdwg.mxu0
    %1623 = vmatprep.subr.mxu0 %v1199
    %1624 = vmatpush1.msra.mxu0 %v1198
    %1625 = vmatprep.subr.mxu0 %v1135
    %1626 = vmatpush1.msra.mxu0 %v1134
    %1627 = vmatprep.subr.mxu0 %v1263
    %1628 = vmatpush1.msra.mxu0 %v1262
    %1629 = vmatprep.subr.mxu0 0.0
    %1630 = vmatpush1.msra.mxu0 0.0
    %1631 = vmatprep.subr.mxu0 0.0
    %1632 = vmatpush1.msra.mxu0 0.0
    %1633 = vmatprep.subr.mxu0 0.0
    %1634 = vmatpush1.msra.mxu0 0.0
    %1635 = vmatprep.subr.mxu0 0.0
    %1636 = vmatpush1.msra.mxu0 0.0
    %1637 = vmatprep.subr.mxu0 0.0
    %1638 = vmatpush1.msra.mxu0 0.0
    %1639 = vmatprep.subr.mxu0 0.0
    %1640 = vmatpush1.msra.mxu0 0.0
    %1641 = vmatprep.subr.mxu0 0.0
    %1642 = vmatpush1.msra.mxu0 0.0
    %1643 = vmatprep.subr.mxu0 0.0
    %1644 = vmatpush1.msra.mxu0 0.0
    %1645 = vmatprep.subr.mxu0 0.0
    %1646 = vmatpush1.msra.mxu0 0.0
    %1647 = vmatprep.subr.mxu0 0.0
    %1648 = vmatpush1.msra.mxu0 0.0
    %1649 = vmatprep.subr.mxu0 0.0
    %1650 = vmatpush1.msra.mxu0 0.0
    %1651 = vmatprep.subr.mxu0 0.0
    %1652 = vmatpush1.msra.mxu0 0.0
    %1653 = vmatprep.subr.mxu0 0.0
    %1654 = vmatpush1.msra.mxu0 0.0
    %1655 = vmatprep.subr.mxu0 0.0
    %1656 = vmatpush1.msra.mxu0 0.0
    %1657 = vmatprep.subr.mxu0 0.0
    %1658 = vmatpush1.msra.mxu0 0.0
    %1659 = vmatprep.subr.mxu0 0.0
    %1660 = vmatpush1.msra.mxu0 0.0
    %1661 = vmatprep.subr.mxu0 0.0
    %1662 = vmatpush1.msra.mxu0 0.0
    %1663 = vmatprep.subr.mxu0 0.0
    %1664 = vmatpush1.msra.mxu0 0.0
    %1665 = vmatprep.subr.mxu0 0.0
    %1666 = vmatpush1.msra.mxu0 0.0
    %1667 = vmatprep.subr.mxu0 0.0
    %1668 = vmatpush1.msra.mxu0 0.0
    %1669 = vmatprep.subr.mxu0 0.0
    %1670 = vmatpush1.msra.mxu0 0.0
    %1671 = vmatprep.subr.mxu0 0.0
    %1672 = vmatpush1.msra.mxu0 0.0
    %1673 = vmatprep.subr.mxu0 0.0
    %1674 = vmatpush1.msra.mxu0 0.0
    %1675 = vmatprep.subr.mxu0 0.0
    %1676 = vmatpush1.msra.mxu0 0.0
    %1677 = vmatprep.subr.mxu0 0.0
    %1678 = vmatpush1.msra.mxu0 0.0
    %1679 = vmatprep.subr.mxu0 0.0
    %1680 = vmatpush1.msra.mxu0 0.0
    %1681 = vmatprep.subr.mxu0 0.0
    %1682 = vmatpush1.msra.mxu0 0.0
    %1683 = vmatprep.subr.mxu0 0.0
    %1684 = vmatpush1.msra.mxu0 0.0
    %1685 = vmatprep.subr.mxu0 0.0
    %1686 = vmatpush1.msra.mxu0 0.0
    %1687 = vmatprep.mubr.f32.mxu0 0.0
    %1688 = vmatmul.mubr.f32.gmra.mrb[0].mxu0 %v554
    %v1689 = vpop.f32.mrb[0].mxu0
    %v1690 = vadd.f32 %v389, %v1689
    %v1691 = vpop.f32.mrb[0].mxu0
    %v1692 = vadd.f32 %v389, %v1691
    %1693 = vdwg.mxu0
    %1694 = vmatprep.subr.mxu0 %v1201
    %1695 = vmatpush1.msra.mxu0 %v1200
    %1696 = vmatprep.subr.mxu0 %v1137
    %1697 = vmatpush1.msra.mxu0 %v1136
    %1698 = vmatprep.subr.mxu0 %v1265
    %1699 = vmatpush1.msra.mxu0 %v1264
    %1700 = vmatprep.subr.mxu0 0.0
    %1701 = vmatpush1.msra.mxu0 0.0
    %1702 = vmatprep.subr.mxu0 0.0
    %1703 = vmatpush1.msra.mxu0 0.0
    %1704 = vmatprep.subr.mxu0 0.0
    %1705 = vmatpush1.msra.mxu0 0.0
    %1706 = vmatprep.subr.mxu0 0.0
    %1707 = vmatpush1.msra.mxu0 0.0
    %1708 = vmatprep.subr.mxu0 0.0
    %1709 = vmatpush1.msra.mxu0 0.0
    %1710 = vmatprep.subr.mxu0 0.0
    %1711 = vmatpush1.msra.mxu0 0.0
    %1712 = vmatprep.subr.mxu0 0.0
    %1713 = vmatpush1.msra.mxu0 0.0
    %1714 = vmatprep.subr.mxu0 0.0
    %1715 = vmatpush1.msra.mxu0 0.0
    %1716 = vmatprep.subr.mxu0 0.0
    %1717 = vmatpush1.msra.mxu0 0.0
    %1718 = vmatprep.subr.mxu0 0.0
    %1719 = vmatpush1.msra.mxu0 0.0
    %1720 = vmatprep.subr.mxu0 0.0
    %1721 = vmatpush1.msra.mxu0 0.0
    %1722 = vmatprep.subr.mxu0 0.0
    %1723 = vmatpush1.msra.mxu0 0.0
    %1724 = vmatprep.subr.mxu0 0.0
    %1725 = vmatpush1.msra.mxu0 0.0
    %1726 = vmatprep.subr.mxu0 0.0
    %1727 = vmatpush1.msra.mxu0 0.0
    %1728 = vmatprep.subr.mxu0 0.0
    %1729 = vmatpush1.msra.mxu0 0.0
    %1730 = vmatprep.subr.mxu0 0.0
    %1731 = vmatpush1.msra.mxu0 0.0
    %1732 = vmatprep.subr.mxu0 0.0
    %1733 = vmatpush1.msra.mxu0 0.0
    %1734 = vmatprep.subr.mxu0 0.0
    %1735 = vmatpush1.msra.mxu0 0.0
    %1736 = vmatprep.subr.mxu0 0.0
    %1737 = vmatpush1.msra.mxu0 0.0
    %1738 = vmatprep.subr.mxu0 0.0
    %1739 = vmatpush1.msra.mxu0 0.0
    %1740 = vmatprep.subr.mxu0 0.0
    %1741 = vmatpush1.msra.mxu0 0.0
    %1742 = vmatprep.subr.mxu0 0.0
    %1743 = vmatpush1.msra.mxu0 0.0
    %1744 = vmatprep.subr.mxu0 0.0
    %1745 = vmatpush1.msra.mxu0 0.0
    %1746 = vmatprep.subr.mxu0 0.0
    %1747 = vmatpush1.msra.mxu0 0.0
    %1748 = vmatprep.subr.mxu0 0.0
    %1749 = vmatpush1.msra.mxu0 0.0
    %1750 = vmatprep.subr.mxu0 0.0
    %1751 = vmatpush1.msra.mxu0 0.0
    %1752 = vmatprep.subr.mxu0 0.0
    %1753 = vmatpush1.msra.mxu0 0.0
    %1754 = vmatprep.subr.mxu0 0.0
    %1755 = vmatpush1.msra.mxu0 0.0
    %1756 = vmatprep.subr.mxu0 0.0
    %1757 = vmatpush1.msra.mxu0 0.0
    %1758 = vmatprep.mubr.f32.mxu0 0.0
    %1759 = vmatmul.mubr.f32.gmra.mrb[0].mxu0 %v554
    %v1760 = vpop.f32.mrb[0].mxu0
    %v1761 = vadd.f32 %v389, %v1760
    %v1762 = vpop.f32.mrb[0].mxu0
    %v1763 = vadd.f32 %v389, %v1762
    %1764 = vdwg.mxu0
    %1765 = vmatprep.subr.mxu0 %v1203
    %1766 = vmatpush1.msra.mxu0 %v1202
    %1767 = vmatprep.subr.mxu0 %v1139
    %1768 = vmatpush1.msra.mxu0 %v1138
    %1769 = vmatprep.subr.mxu0 %v1267
    %1770 = vmatpush1.msra.mxu0 %v1266
    %1771 = vmatprep.subr.mxu0 0.0
    %1772 = vmatpush1.msra.mxu0 0.0
    %1773 = vmatprep.subr.mxu0 0.0
    %1774 = vmatpush1.msra.mxu0 0.0
    %1775 = vmatprep.subr.mxu0 0.0
    %1776 = vmatpush1.msra.mxu0 0.0
    %1777 = vmatprep.subr.mxu0 0.0
    %1778 = vmatpush1.msra.mxu0 0.0
    %1779 = vmatprep.subr.mxu0 0.0
    %1780 = vmatpush1.msra.mxu0 0.0
    %1781 = vmatprep.subr.mxu0 0.0
    %1782 = vmatpush1.msra.mxu0 0.0
    %1783 = vmatprep.subr.mxu0 0.0
    %1784 = vmatpush1.msra.mxu0 0.0
    %1785 = vmatprep.subr.mxu0 0.0
    %1786 = vmatpush1.msra.mxu0 0.0
    %1787 = vmatprep.subr.mxu0 0.0
    %1788 = vmatpush1.msra.mxu0 0.0
    %1789 = vmatprep.subr.mxu0 0.0
    %1790 = vmatpush1.msra.mxu0 0.0
    %1791 = vmatprep.subr.mxu0 0.0
    %1792 = vmatpush1.msra.mxu0 0.0
    %1793 = vmatprep.subr.mxu0 0.0
    %1794 = vmatpush1.msra.mxu0 0.0
    %1795 = vmatprep.subr.mxu0 0.0
    %1796 = vmatpush1.msra.mxu0 0.0
    %1797 = vmatprep.subr.mxu0 0.0
    %1798 = vmatpush1.msra.mxu0 0.0
    %1799 = vmatprep.subr.mxu0 0.0
    %1800 = vmatpush1.msra.mxu0 0.0
    %1801 = vmatprep.subr.mxu0 0.0
    %1802 = vmatpush1.msra.mxu0 0.0
    %1803 = vmatprep.subr.mxu0 0.0
    %1804 = vmatpush1.msra.mxu0 0.0
    %1805 = vmatprep.subr.mxu0 0.0
    %1806 = vmatpush1.msra.mxu0 0.0
    %1807 = vmatprep.subr.mxu0 0.0
    %1808 = vmatpush1.msra.mxu0 0.0
    %1809 = vmatprep.subr.mxu0 0.0
    %1810 = vmatpush1.msra.mxu0 0.0
    %1811 = vmatprep.subr.mxu0 0.0
    %1812 = vmatpush1.msra.mxu0 0.0
    %1813 = vmatprep.subr.mxu0 0.0
    %1814 = vmatpush1.msra.mxu0 0.0
    %1815 = vmatprep.subr.mxu0 0.0
    %1816 = vmatpush1.msra.mxu0 0.0
    %1817 = vmatprep.subr.mxu0 0.0
    %1818 = vmatpush1.msra.mxu0 0.0
    %1819 = vmatprep.subr.mxu0 0.0
    %1820 = vmatpush1.msra.mxu0 0.0
    %1821 = vmatprep.subr.mxu0 0.0
    %1822 = vmatpush1.msra.mxu0 0.0
    %1823 = vmatprep.subr.mxu0 0.0
    %1824 = vmatpush1.msra.mxu0 0.0
    %1825 = vmatprep.subr.mxu0 0.0
    %1826 = vmatpush1.msra.mxu0 0.0
    %1827 = vmatprep.subr.mxu0 0.0
    %1828 = vmatpush1.msra.mxu0 0.0
    %1829 = vmatprep.mubr.f32.mxu0 0.0
    %1830 = vmatmul.mubr.f32.gmra.mrb[0].mxu0 %v554
    %v1831 = vpop.f32.mrb[0].mxu0
    %v1832 = vadd.f32 %v389, %v1831
    %v1833 = vpop.f32.mrb[0].mxu0
    %v1834 = vadd.f32 %v389, %v1833
    %1835 = vdwg.mxu0
    %v1836 = vadd.f32 %v368, %v1335
    %v1837 = vadd.f32 %v369, %v1337
    %v1838 = vadd.f32 %v370, %v1406
    %v1839 = vadd.f32 %v371, %v1408
    %v1840 = vadd.f32 %v372, %v1477
    %v1841 = vadd.f32 %v373, %v1479
    %v1842 = vadd.f32 %v374, %v1548
    %v1843 = vadd.f32 %v375, %v1550
    %v1844 = vadd.f32 %v376, %v1619
    %v1845 = vadd.f32 %v377, %v1621
    %v1846 = vadd.f32 %v378, %v1690
    %v1847 = vadd.f32 %v379, %v1692
    %v1848 = vadd.f32 %v380, %v1761
    %v1849 = vadd.f32 %v381, %v1763
    %v1850 = vadd.f32 %v382, %v1832
    %v1851 = vadd.f32 %v383, %v1834
    %1852 = vst [vmem:[#allocation5] sm:$0xff] %v1836
    %s1853 = scalar_lea.vmem [#allocation5], 8
    %1854 = vst [vmem:[%s1853] sm:$0xff] %v1837
    %s1855 = scalar_lea.vmem [#allocation5], 16
    %1856 = vst [vmem:[%s1855] sm:$0xff] %v1838
    %s1857 = scalar_lea.vmem [#allocation5], 24
    %1858 = vst [vmem:[%s1857] sm:$0xff] %v1839
    %s1859 = scalar_lea.vmem [#allocation5], 32
    %1860 = vst [vmem:[%s1859] sm:$0xff] %v1840
    %s1861 = scalar_lea.vmem [#allocation5], 40
    %1862 = vst [vmem:[%s1861] sm:$0xff] %v1841
    %s1863 = scalar_lea.vmem [#allocation5], 48
    %1864 = vst [vmem:[%s1863] sm:$0xff] %v1842
    %s1865 = scalar_lea.vmem [#allocation5], 56
    %1866 = vst [vmem:[%s1865] sm:$0xff] %v1843
    %s1867 = scalar_lea.vmem [#allocation5], 64
    %1868 = vst [vmem:[%s1867] sm:$0xff] %v1844
    %s1869 = scalar_lea.vmem [#allocation5], 72
    %1870 = vst [vmem:[%s1869] sm:$0xff] %v1845
    %s1871 = scalar_lea.vmem [#allocation5], 80
    %1872 = vst [vmem:[%s1871] sm:$0xff] %v1846
    %s1873 = scalar_lea.vmem [#allocation5], 88
    %1874 = vst [vmem:[%s1873] sm:$0xff] %v1847
    %s1875 = scalar_lea.vmem [#allocation5], 96
    %1876 = vst [vmem:[%s1875] sm:$0xff] %v1848
    %s1877 = scalar_lea.vmem [#allocation5], 104
    %1878 = vst [vmem:[%s1877] sm:$0xff] %v1849
    %s1879 = scalar_lea.vmem [#allocation5], 112
    %1880 = vst [vmem:[%s1879] sm:$0xff] %v1850
    %s1881 = scalar_lea.vmem [#allocation5], 120
    %1882 = vst [vmem:[%s1881] sm:$0xff] %v1851
    // Predicated region
    $region18: #{tpu_custom_call.1} parent=1 // pred_check
      _
    $region19: #{tpu_custom_call.1} parent=1 // pred_check_branch
      %1884 = sbr.rel (0) target = $region21
    $region20: #{tpu_custom_call.1} parent=1 // pred_region
      %s1886 = ssub.s32 2048, 2048
      %1887 = vsyncadd [#allocation4], %s1886
      %s1888 = sshll.u32 [#allocation5], 4
      %s1889 = int_to_ptr.vmem [resolvable:$true] %s1888
      %1894 = dma.vmem_to_hbm [thread:$0]  %s1889, 2048, %s3, [#allocation4], 128, 128, 8
    $region21: #{tpu_custom_call.1} parent=1 // pred_fallthru
      _
    // Predicated region
    $region22: #{tpu_custom_call.1} parent=1 // pred_check
      _
    $region23: #{tpu_custom_call.1} parent=1 // pred_check_branch
      %1896 = sbr.rel (0) target = $region25
    $region24: #{tpu_custom_call.1} parent=1 // pred_region
      %1897 = dma.done [#allocation4], 2048
    $region25: #{tpu_custom_call.1} parent=1 // pred_fallthru
      _
    %1898 = vsyncpa [#allocation3], 1
    %1899 = vsyncpa [#allocation4], 1

</llo_original>
